<compile_context>
chip_gen: v7x
topology: tpu7x:2x2x1
jax: 0.10.0
libtpu: 0.0.40
codegen_flags: <defaults>
</compile_context>

<pallas_src>
import jax
import jax.numpy as jnp
from jax import lax
from jax.experimental import pallas as pl
from jax.experimental.pallas import tpu as pltpu

N_SUB = 8  # fixed RK4 sub-steps per output interval


def decoder_kernel(t_ref, z0_ref, w1_ref, b1_ref, w2_ref, b2_ref,
                   wp_ref, bp_ref, out_ref, zhist_ref):
    B, D = z0_ref.shape
    H = w1_ref.shape[1]
    TB, P = out_ref.shape
    T = TB // B

    # ---- hoisted once: bf16 MXU operands, f32 bias broadcasts, W2@W1 folding.
    w1_f32 = w1_ref[...]                              # (D, H)
    w2_f32 = w2_ref[...]                              # (H, D)
    w1 = w1_f32.astype(jnp.bfloat16)
    w2 = w2_f32.astype(jnp.bfloat16)
    wp = wp_ref[...].astype(jnp.bfloat16)             # (D, P)
    # W21 = W2 @ W1 folds "apply W2 then W1" into one (H, H) dot per RK4 stage.
    # Precomputed in f32, cast once (limits extra rounding).
    w21 = jnp.dot(w2_f32, w1_f32,
                  preferred_element_type=jnp.float32).astype(jnp.bfloat16)
    b1 = jnp.broadcast_to(b1_ref[...], (B, H))        # f32
    b2 = jnp.broadcast_to(b2_ref[...], (B, D))        # f32
    bp = jnp.broadcast_to(bp_ref[...], (TB, P))       # f32
    # b2 @ W1, reused by every stage-2..4 pre-activation.
    b2w1 = jnp.broadcast_to(
        jnp.dot(b2_ref[...], w1_f32, preferred_element_type=jnp.float32),
        (B, H))                                       # f32

    def dot_bf16(a, w):
        # bf16 only at the MXU boundary; accumulation / state stays f32.
        return jnp.dot(a.astype(jnp.bfloat16), w,
                       preferred_element_type=jnp.float32)

    z0 = z0_ref[...]
    # odeint returns the initial condition at t[0]; projection is deferred.
    zhist_ref[pl.ds(0, B), :] = z0

    def interval(t, z):
        dt = (t_ref[t + 1] - t_ref[t]) / jnp.float32(N_SUB)
        # Hoisted out of the unrolled RK4 body (no re-emitted splats per stage).
        half_dt = 0.5 * dt
        dt_sixth = dt / 6.0
        b2_dt = dt * b2                                # (B, D) f32

        def rk4_step(_, zz):
            # 5 serial MXU dots per sub-step (vs 8 naively):
            #   zz@W1, h1@W21, h2@W21, h3@W21, (h1+2h2+2h3+h4)@W2
            zw1b = dot_bf16(zz, w1) + b1               # z@W1 + b1   (B, H)
            h1 = jnp.tanh(zw1b)
            g1 = dot_bf16(h1, w21) + b2w1              # k1 @ W1 (bias folded)
            h2 = jnp.tanh(zw1b + half_dt * g1)
            g2 = dot_bf16(h2, w21) + b2w1
            h3 = jnp.tanh(zw1b + half_dt * g2)
            g3 = dot_bf16(h3, w21) + b2w1
            h4 = jnp.tanh(zw1b + dt * g3)
            h_sum = h1 + 2.0 * (h2 + h3) + h4
            # z + (dt/6)*(k1+2k2+2k3+k4)  ==  z + (dt/6)*h_sum@W2 + dt*b2
            return zz + dt_sixth * dot_bf16(h_sum, w2) + b2_dt

        z = lax.fori_loop(0, N_SUB, rk4_step, z, unroll=True)
        row = pl.multiple_of((t + 1) * B, B)
        zhist_ref[pl.ds(row, B), :] = z
        return z

    lax.fori_loop(0, T - 1, interval, z0)

    # ---- deferred projection: one (T*B, D) @ (D, P) matmul + one dense store.
    out_ref[...] = (jnp.dot(zhist_ref[...].astype(jnp.bfloat16), wp,
                            preferred_element_type=jnp.float32) + bp)


def decoder_forward(time_steps, z0, w1, b1, w2, b2, wp, bp):
    """time_steps: (T,) f32; z0: (B, D) f32 -> (T, B, P) f32."""
    T = time_steps.shape[0]
    B, D = z0.shape
    H = w1.shape[1]
    P = wp.shape[1]

    b1 = b1.reshape(1, H)
    b2 = b2.reshape(1, D)
    bp = bp.reshape(1, P)

    vmem = pltpu.MemorySpace.VMEM
    smem = pltpu.MemorySpace.SMEM

    # Single invocation (no grid): every operand is a full-extent block, the
    # constant weights are DMA'd exactly once, the z history lives in a VMEM
    # scratch and the whole (T*B, P) output is produced by one post-loop matmul
    # and written back with one dense store.
    out = pl.pallas_call(
        decoder_kernel,
        out_shape=jax.ShapeDtypeStruct((T * B, P), jnp.float32),
        in_specs=[
            pl.BlockSpec(memory_space=smem),   # time steps (scalar path)
            pl.BlockSpec(memory_space=vmem),   # z0
            pl.BlockSpec(memory_space=vmem),   # W1
            pl.BlockSpec(memory_space=vmem),   # b1
            pl.BlockSpec(memory_space=vmem),   # W2
            pl.BlockSpec(memory_space=vmem),   # b2
            pl.BlockSpec(memory_space=vmem),   # Wp
            pl.BlockSpec(memory_space=vmem),   # bp
        ],
        out_specs=pl.BlockSpec(memory_space=vmem),
        scratch_shapes=[pltpu.VMEM((T * B, D), jnp.float32)],  # z history
    )(time_steps, z0, w1, b1, w2, b2, wp, bp)

    # Free row-major reshape in the wrapper: (T*B, P) -> (T, B, P).
    return out.reshape(T, B, P)


if __name__ == "__main__":
    # Small shapes consistent with the module's forward:
    #   time_steps_prediction: (T,) = (8,)
    #   latent_variables:      (B, latent_dims) = (8, 32)
    #   output:                (T, B, time_series_dims) = (8, 8, 16)
    T, B, D, H, P = 8, 8, 32, 64, 16

    key = jax.random.PRNGKey(0)
    k0, k1, k2, k3, k4, k5, k6 = jax.random.split(key, 7)

    time_steps = jnp.linspace(0.0, 1.0, T, dtype=jnp.float32)
    z0 = jax.random.normal(k0, (B, D), dtype=jnp.float32)

    # Deterministic parameter init (small scale keeps the dynamics stable).
    w1 = 0.1 * jax.random.normal(k1, (D, H), dtype=jnp.float32)
    b1 = 0.1 * jax.random.normal(k2, (H,), dtype=jnp.float32)
    w2 = 0.1 * jax.random.normal(k3, (H, D), dtype=jnp.float32)
    b2 = 0.1 * jax.random.normal(k4, (D,), dtype=jnp.float32)
    wp = 0.1 * jax.random.normal(k5, (D, P), dtype=jnp.float32)
    bp = 0.1 * jax.random.normal(k6, (P,), dtype=jnp.float32)

    out = decoder_forward(time_steps, z0, w1, b1, w2, b2, wp, bp)
    out = jax.block_until_ready(out)

    assert out.shape == (T, B, P) and out.dtype == jnp.float32
    assert bool(jnp.all(jnp.isfinite(out)))
    print("KERNEL_OK")
</pallas_src>

<mosaic_0001>
module attributes {stable_mosaic.version = 11 : i64} {
  func.func @decoder_kernel(%arg0: memref<8xf32, #tpu.memory_space<smem>>, %arg1: memref<8x32xf32, #tpu.memory_space<vmem>>, %arg2: memref<32x64xf32, #tpu.memory_space<vmem>>, %arg3: memref<1x64xf32, #tpu.memory_space<vmem>>, %arg4: memref<64x32xf32, #tpu.memory_space<vmem>>, %arg5: memref<1x32xf32, #tpu.memory_space<vmem>>, %arg6: memref<32x16xf32, #tpu.memory_space<vmem>>, %arg7: memref<1x16xf32, #tpu.memory_space<vmem>>, %arg8: memref<64x16xf32, #tpu.memory_space<vmem>>, %arg9: memref<64x32xf32, #tpu.memory_space<vmem>>) attributes {dimension_semantics = [], scalar_prefetch = 0 : i64, scratch_operands = 1 : i64, tpu.core_type = #tpu.core_type<tc>} {
    %c0 = arith.constant 0 : index
    %c0_0 = arith.constant 0 : index
    %0 = vector.load %arg2[%c0, %c0_0] : memref<32x64xf32, #tpu.memory_space<vmem>>, vector<32x64xf32>
    %c0_1 = arith.constant 0 : index
    %c0_2 = arith.constant 0 : index
    %1 = vector.load %arg4[%c0_1, %c0_2] : memref<64x32xf32, #tpu.memory_space<vmem>>, vector<64x32xf32>
    %2 = arith.truncf %0 : vector<32x64xf32> to vector<32x64xbf16>
    %3 = arith.truncf %1 : vector<64x32xf32> to vector<64x32xbf16>
    %c0_3 = arith.constant 0 : index
    %c0_4 = arith.constant 0 : index
    %4 = vector.load %arg6[%c0_3, %c0_4] : memref<32x16xf32, #tpu.memory_space<vmem>>, vector<32x16xf32>
    %5 = arith.truncf %4 : vector<32x16xf32> to vector<32x16xbf16>
    %cst = arith.constant dense<0.000000e+00> : vector<64x64xf32>
    %6 = tpu.matmul %1, %0, %cst {dimension_numbers = #tpu.dot_dimension_numbers<[1], [0], [0], [1], [0, 0, 1, 1], [], []>} : vector<64x32xf32>, vector<32x64xf32>, vector<64x64xf32> -> vector<64x64xf32>
    %7 = arith.truncf %6 : vector<64x64xf32> to vector<64x64xbf16>
    %c0_5 = arith.constant 0 : index
    %c0_6 = arith.constant 0 : index
    %8 = vector.load %arg3[%c0_5, %c0_6] : memref<1x64xf32, #tpu.memory_space<vmem>>, vector<1x64xf32>
    %9 = vector.shape_cast %8 : vector<1x64xf32> to vector<1x64xf32>
    %10 = vector.broadcast %9 : vector<1x64xf32> to vector<8x64xf32>
    %c0_7 = arith.constant 0 : index
    %c0_8 = arith.constant 0 : index
    %11 = vector.load %arg5[%c0_7, %c0_8] : memref<1x32xf32, #tpu.memory_space<vmem>>, vector<1x32xf32>
    %12 = vector.shape_cast %11 : vector<1x32xf32> to vector<1x32xf32>
    %13 = vector.broadcast %12 : vector<1x32xf32> to vector<8x32xf32>
    %c0_9 = arith.constant 0 : index
    %c0_10 = arith.constant 0 : index
    %14 = vector.load %arg7[%c0_9, %c0_10] : memref<1x16xf32, #tpu.memory_space<vmem>>, vector<1x16xf32>
    %15 = vector.shape_cast %14 : vector<1x16xf32> to vector<1x16xf32>
    %16 = vector.broadcast %15 : vector<1x16xf32> to vector<64x16xf32>
    %c0_11 = arith.constant 0 : index
    %c0_12 = arith.constant 0 : index
    %17 = vector.load %arg5[%c0_11, %c0_12] : memref<1x32xf32, #tpu.memory_space<vmem>>, vector<1x32xf32>
    %cst_13 = arith.constant dense<0.000000e+00> : vector<1x64xf32>
    %18 = tpu.matmul %17, %0, %cst_13 {dimension_numbers = #tpu.dot_dimension_numbers<[1], [0], [0], [1], [0, 0, 1, 1], [], []>} : vector<1x32xf32>, vector<32x64xf32>, vector<1x64xf32> -> vector<1x64xf32>
    %19 = vector.shape_cast %18 : vector<1x64xf32> to vector<1x64xf32>
    %20 = vector.broadcast %19 : vector<1x64xf32> to vector<8x64xf32>
    %c0_14 = arith.constant 0 : index
    %c0_15 = arith.constant 0 : index
    %21 = vector.load %arg1[%c0_14, %c0_15] : memref<8x32xf32, #tpu.memory_space<vmem>>, vector<8x32xf32>
    %c0_16 = arith.constant 0 : index
    %c0_17 = arith.constant 0 : index
    %22 = vector.load %arg9[%c0_16, %c0_17] : memref<64x32xf32, #tpu.memory_space<vmem>>, vector<8x32xf32>
    tpu.vector_store %arg9[%c0_16, %c0_17], %21 {strides = array<i32>} : memref<64x32xf32, #tpu.memory_space<vmem>>, vector<8x32xf32>,
    %c0_i32 = arith.constant 0 : i32
    %c7_i32 = arith.constant 7 : i32
    %23 = arith.addi %c0_i32, %c7_i32 : i32
    %c1_i32 = arith.constant 1 : i32
    %24 = scf.for %arg10 = %c0_i32 to %23 step %c1_i32 iter_args(%arg11 = %21) -> (vector<8x32xf32>)  : i32 {
      %c1_i32_24 = arith.constant 1 : i32
      %30 = arith.addi %arg10, %c1_i32_24 : i32
      %31 = arith.index_cast %30 : i32 to index
      %32 = memref.load %arg0[%31] : memref<8xf32, #tpu.memory_space<smem>>
      %33 = arith.index_cast %arg10 : i32 to index
      %34 = memref.load %arg0[%33] : memref<8xf32, #tpu.memory_space<smem>>
      %35 = arith.subf %32, %34 : f32
      %cst_25 = arith.constant 8.000000e+00 : f32
      %36 = arith.divf %35, %cst_25 : f32
      %cst_26 = arith.constant 5.000000e-01 : f32
      %37 = arith.mulf %cst_26, %36 : f32
      %cst_27 = arith.constant 6.000000e+00 : f32
      %38 = arith.divf %36, %cst_27 : f32
      %39 = vector.broadcast %36 : f32 to vector<8x32xf32>
      %40 = arith.mulf %39, %13 : vector<8x32xf32>
      %c0_i32_28 = arith.constant 0 : i32
      %41 = arith.truncf %arg11 : vector<8x32xf32> to vector<8x32xbf16>
      %cst_29 = arith.constant dense<0.000000e+00> : vector<8x64xf32>
      %42 = tpu.matmul %41, %2, %cst_29 {dimension_numbers = #tpu.dot_dimension_numbers<[1], [0], [0], [1], [0, 0, 1, 1], [], []>} : vector<8x32xbf16>, vector<32x64xbf16>, vector<8x64xf32> -> vector<8x64xf32>
      %43 = arith.addf %42, %10 : vector<8x64xf32>
      %44 = math.tanh %43 : vector<8x64xf32>
      %45 = arith.truncf %44 : vector<8x64xf32> to vector<8x64xbf16>
      %cst_30 = arith.constant dense<0.000000e+00> : vector<8x64xf32>
      %46 = tpu.matmul %45, %7, %cst_30 {dimension_numbers = #tpu.dot_dimension_numbers<[1], [0], [0], [1], [0, 0, 1, 1], [], []>} : vector<8x64xbf16>, vector<64x64xbf16>, vector<8x64xf32> -> vector<8x64xf32>
      %47 = arith.addf %46, %20 : vector<8x64xf32>
      %48 = vector.broadcast %37 : f32 to vector<8x64xf32>
      %49 = arith.mulf %48, %47 : vector<8x64xf32>
      %50 = arith.addf %43, %49 : vector<8x64xf32>
      %51 = math.tanh %50 : vector<8x64xf32>
      %52 = arith.truncf %51 : vector<8x64xf32> to vector<8x64xbf16>
      %cst_31 = arith.constant dense<0.000000e+00> : vector<8x64xf32>
      %53 = tpu.matmul %52, %7, %cst_31 {dimension_numbers = #tpu.dot_dimension_numbers<[1], [0], [0], [1], [0, 0, 1, 1], [], []>} : vector<8x64xbf16>, vector<64x64xbf16>, vector<8x64xf32> -> vector<8x64xf32>
      %54 = arith.addf %53, %20 : vector<8x64xf32>
      %55 = vector.broadcast %37 : f32 to vector<8x64xf32>
      %56 = arith.mulf %55, %54 : vector<8x64xf32>
      %57 = arith.addf %43, %56 : vector<8x64xf32>
      %58 = math.tanh %57 : vector<8x64xf32>
      %59 = arith.truncf %58 : vector<8x64xf32> to vector<8x64xbf16>
      %cst_32 = arith.constant dense<0.000000e+00> : vector<8x64xf32>
      %60 = tpu.matmul %59, %7, %cst_32 {dimension_numbers = #tpu.dot_dimension_numbers<[1], [0], [0], [1], [0, 0, 1, 1], [], []>} : vector<8x64xbf16>, vector<64x64xbf16>, vector<8x64xf32> -> vector<8x64xf32>
      %61 = arith.addf %60, %20 : vector<8x64xf32>
      %62 = vector.broadcast %36 : f32 to vector<8x64xf32>
      %63 = arith.mulf %62, %61 : vector<8x64xf32>
      %64 = arith.addf %43, %63 : vector<8x64xf32>
      %65 = math.tanh %64 : vector<8x64xf32>
      %66 = arith.addf %51, %58 : vector<8x64xf32>
      %cst_33 = arith.constant 2.000000e+00 : f32
      %67 = vector.broadcast %cst_33 : f32 to vector<8x64xf32>
      %68 = arith.mulf %67, %66 : vector<8x64xf32>
      %69 = arith.addf %44, %68 : vector<8x64xf32>
      %70 = arith.addf %69, %65 : vector<8x64xf32>
      %71 = arith.truncf %70 : vector<8x64xf32> to vector<8x64xbf16>
      %cst_34 = arith.constant dense<0.000000e+00> : vector<8x32xf32>
      %72 = tpu.matmul %71, %3, %cst_34 {dimension_numbers = #tpu.dot_dimension_numbers<[1], [0], [0], [1], [0, 0, 1, 1], [], []>} : vector<8x64xbf16>, vector<64x32xbf16>, vector<8x32xf32> -> vector<8x32xf32>
      %73 = vector.broadcast %38 : f32 to vector<8x32xf32>
      %74 = arith.mulf %73, %72 : vector<8x32xf32>
      %75 = arith.addf %arg11, %74 : vector<8x32xf32>
      %76 = arith.addf %75, %40 : vector<8x32xf32>
      %c1_i32_35 = arith.constant 1 : i32
      %77 = arith.truncf %76 : vector<8x32xf32> to vector<8x32xbf16>
      %cst_36 = arith.constant dense<0.000000e+00> : vector<8x64xf32>
      %78 = tpu.matmul %77, %2, %cst_36 {dimension_numbers = #tpu.dot_dimension_numbers<[1], [0], [0], [1], [0, 0, 1, 1], [], []>} : vector<8x32xbf16>, vector<32x64xbf16>, vector<8x64xf32> -> vector<8x64xf32>
      %79 = arith.addf %78, %10 : vector<8x64xf32>
      %80 = math.tanh %79 : vector<8x64xf32>
      %81 = arith.truncf %80 : vector<8x64xf32> to vector<8x64xbf16>
      %cst_37 = arith.constant dense<0.000000e+00> : vector<8x64xf32>
      %82 = tpu.matmul %81, %7, %cst_37 {dimension_numbers = #tpu.dot_dimension_numbers<[1], [0], [0], [1], [0, 0, 1, 1], [], []>} : vector<8x64xbf16>, vector<64x64xbf16>, vector<8x64xf32> -> vector<8x64xf32>
      %83 = arith.addf %82, %20 : vector<8x64xf32>
      %84 = vector.broadcast %37 : f32 to vector<8x64xf32>
      %85 = arith.mulf %84, %83 : vector<8x64xf32>
      %86 = arith.addf %79, %85 : vector<8x64xf32>
      %87 = math.tanh %86 : vector<8x64xf32>
      %88 = arith.truncf %87 : vector<8x64xf32> to vector<8x64xbf16>
      %cst_38 = arith.constant dense<0.000000e+00> : vector<8x64xf32>
      %89 = tpu.matmul %88, %7, %cst_38 {dimension_numbers = #tpu.dot_dimension_numbers<[1], [0], [0], [1], [0, 0, 1, 1], [], []>} : vector<8x64xbf16>, vector<64x64xbf16>, vector<8x64xf32> -> vector<8x64xf32>
      %90 = arith.addf %89, %20 : vector<8x64xf32>
      %91 = vector.broadcast %37 : f32 to vector<8x64xf32>
      %92 = arith.mulf %91, %90 : vector<8x64xf32>
      %93 = arith.addf %79, %92 : vector<8x64xf32>
      %94 = math.tanh %93 : vector<8x64xf32>
      %95 = arith.truncf %94 : vector<8x64xf32> to vector<8x64xbf16>
      %cst_39 = arith.constant dense<0.000000e+00> : vector<8x64xf32>
      %96 = tpu.matmul %95, %7, %cst_39 {dimension_numbers = #tpu.dot_dimension_numbers<[1], [0], [0], [1], [0, 0, 1, 1], [], []>} : vector<8x64xbf16>, vector<64x64xbf16>, vector<8x64xf32> -> vector<8x64xf32>
      %97 = arith.addf %96, %20 : vector<8x64xf32>
      %98 = vector.broadcast %36 : f32 to vector<8x64xf32>
      %99 = arith.mulf %98, %97 : vector<8x64xf32>
      %100 = arith.addf %79, %99 : vector<8x64xf32>
      %101 = math.tanh %100 : vector<8x64xf32>
      %102 = arith.addf %87, %94 : vector<8x64xf32>
      %cst_40 = arith.constant 2.000000e+00 : f32
      %103 = vector.broadcast %cst_40 : f32 to vector<8x64xf32>
      %104 = arith.mulf %103, %102 : vector<8x64xf32>
      %105 = arith.addf %80, %104 : vector<8x64xf32>
      %106 = arith.addf %105, %101 : vector<8x64xf32>
      %107 = arith.truncf %106 : vector<8x64xf32> to vector<8x64xbf16>
      %cst_41 = arith.constant dense<0.000000e+00> : vector<8x32xf32>
      %108 = tpu.matmul %107, %3, %cst_41 {dimension_numbers = #tpu.dot_dimension_numbers<[1], [0], [0], [1], [0, 0, 1, 1], [], []>} : vector<8x64xbf16>, vector<64x32xbf16>, vector<8x32xf32> -> vector<8x32xf32>
      %109 = vector.broadcast %38 : f32 to vector<8x32xf32>
      %110 = arith.mulf %109, %108 : vector<8x32xf32>
      %111 = arith.addf %76, %110 : vector<8x32xf32>
      %112 = arith.addf %111, %40 : vector<8x32xf32>
      %c2_i32 = arith.constant 2 : i32
      %113 = arith.truncf %112 : vector<8x32xf32> to vector<8x32xbf16>
      %cst_42 = arith.constant dense<0.000000e+00> : vector<8x64xf32>
      %114 = tpu.matmul %113, %2, %cst_42 {dimension_numbers = #tpu.dot_dimension_numbers<[1], [0], [0], [1], [0, 0, 1, 1], [], []>} : vector<8x32xbf16>, vector<32x64xbf16>, vector<8x64xf32> -> vector<8x64xf32>
      %115 = arith.addf %114, %10 : vector<8x64xf32>
      %116 = math.tanh %115 : vector<8x64xf32>
      %117 = arith.truncf %116 : vector<8x64xf32> to vector<8x64xbf16>
      %cst_43 = arith.constant dense<0.000000e+00> : vector<8x64xf32>
      %118 = tpu.matmul %117, %7, %cst_43 {dimension_numbers = #tpu.dot_dimension_numbers<[1], [0], [0], [1], [0, 0, 1, 1], [], []>} : vector<8x64xbf16>, vector<64x64xbf16>, vector<8x64xf32> -> vector<8x64xf32>
      %119 = arith.addf %118, %20 : vector<8x64xf32>
      %120 = vector.broadcast %37 : f32 to vector<8x64xf32>
      %121 = arith.mulf %120, %119 : vector<8x64xf32>
      %122 = arith.addf %115, %121 : vector<8x64xf32>
      %123 = math.tanh %122 : vector<8x64xf32>
      %124 = arith.truncf %123 : vector<8x64xf32> to vector<8x64xbf16>
      %cst_44 = arith.constant dense<0.000000e+00> : vector<8x64xf32>
      %125 = tpu.matmul %124, %7, %cst_44 {dimension_numbers = #tpu.dot_dimension_numbers<[1], [0], [0], [1], [0, 0, 1, 1], [], []>} : vector<8x64xbf16>, vector<64x64xbf16>, vector<8x64xf32> -> vector<8x64xf32>
      %126 = arith.addf %125, %20 : vector<8x64xf32>
      %127 = vector.broadcast %37 : f32 to vector<8x64xf32>
      %128 = arith.mulf %127, %126 : vector<8x64xf32>
      %129 = arith.addf %115, %128 : vector<8x64xf32>
      %130 = math.tanh %129 : vector<8x64xf32>
      %131 = arith.truncf %130 : vector<8x64xf32> to vector<8x64xbf16>
      %cst_45 = arith.constant dense<0.000000e+00> : vector<8x64xf32>
      %132 = tpu.matmul %131, %7, %cst_45 {dimension_numbers = #tpu.dot_dimension_numbers<[1], [0], [0], [1], [0, 0, 1, 1], [], []>} : vector<8x64xbf16>, vector<64x64xbf16>, vector<8x64xf32> -> vector<8x64xf32>
      %133 = arith.addf %132, %20 : vector<8x64xf32>
      %134 = vector.broadcast %36 : f32 to vector<8x64xf32>
      %135 = arith.mulf %134, %133 : vector<8x64xf32>
      %136 = arith.addf %115, %135 : vector<8x64xf32>
      %137 = math.tanh %136 : vector<8x64xf32>
      %138 = arith.addf %123, %130 : vector<8x64xf32>
      %cst_46 = arith.constant 2.000000e+00 : f32
      %139 = vector.broadcast %cst_46 : f32 to vector<8x64xf32>
      %140 = arith.mulf %139, %138 : vector<8x64xf32>
      %141 = arith.addf %116, %140 : vector<8x64xf32>
      %142 = arith.addf %141, %137 : vector<8x64xf32>
      %143 = arith.truncf %142 : vector<8x64xf32> to vector<8x64xbf16>
      %cst_47 = arith.constant dense<0.000000e+00> : vector<8x32xf32>
      %144 = tpu.matmul %143, %3, %cst_47 {dimension_numbers = #tpu.dot_dimension_numbers<[1], [0], [0], [1], [0, 0, 1, 1], [], []>} : vector<8x64xbf16>, vector<64x32xbf16>, vector<8x32xf32> -> vector<8x32xf32>
      %145 = vector.broadcast %38 : f32 to vector<8x32xf32>
      %146 = arith.mulf %145, %144 : vector<8x32xf32>
      %147 = arith.addf %112, %146 : vector<8x32xf32>
      %148 = arith.addf %147, %40 : vector<8x32xf32>
      %c3_i32 = arith.constant 3 : i32
      %149 = arith.truncf %148 : vector<8x32xf32> to vector<8x32xbf16>
      %cst_48 = arith.constant dense<0.000000e+00> : vector<8x64xf32>
      %150 = tpu.matmul %149, %2, %cst_48 {dimension_numbers = #tpu.dot_dimension_numbers<[1], [0], [0], [1], [0, 0, 1, 1], [], []>} : vector<8x32xbf16>, vector<32x64xbf16>, vector<8x64xf32> -> vector<8x64xf32>
      %151 = arith.addf %150, %10 : vector<8x64xf32>
      %152 = math.tanh %151 : vector<8x64xf32>
      %153 = arith.truncf %152 : vector<8x64xf32> to vector<8x64xbf16>
      %cst_49 = arith.constant dense<0.000000e+00> : vector<8x64xf32>
      %154 = tpu.matmul %153, %7, %cst_49 {dimension_numbers = #tpu.dot_dimension_numbers<[1], [0], [0], [1], [0, 0, 1, 1], [], []>} : vector<8x64xbf16>, vector<64x64xbf16>, vector<8x64xf32> -> vector<8x64xf32>
      %155 = arith.addf %154, %20 : vector<8x64xf32>
      %156 = vector.broadcast %37 : f32 to vector<8x64xf32>
      %157 = arith.mulf %156, %155 : vector<8x64xf32>
      %158 = arith.addf %151, %157 : vector<8x64xf32>
      %159 = math.tanh %158 : vector<8x64xf32>
      %160 = arith.truncf %159 : vector<8x64xf32> to vector<8x64xbf16>
      %cst_50 = arith.constant dense<0.000000e+00> : vector<8x64xf32>
      %161 = tpu.matmul %160, %7, %cst_50 {dimension_numbers = #tpu.dot_dimension_numbers<[1], [0], [0], [1], [0, 0, 1, 1], [], []>} : vector<8x64xbf16>, vector<64x64xbf16>, vector<8x64xf32> -> vector<8x64xf32>
      %162 = arith.addf %161, %20 : vector<8x64xf32>
      %163 = vector.broadcast %37 : f32 to vector<8x64xf32>
      %164 = arith.mulf %163, %162 : vector<8x64xf32>
      %165 = arith.addf %151, %164 : vector<8x64xf32>
      %166 = math.tanh %165 : vector<8x64xf32>
      %167 = arith.truncf %166 : vector<8x64xf32> to vector<8x64xbf16>
      %cst_51 = arith.constant dense<0.000000e+00> : vector<8x64xf32>
      %168 = tpu.matmul %167, %7, %cst_51 {dimension_numbers = #tpu.dot_dimension_numbers<[1], [0], [0], [1], [0, 0, 1, 1], [], []>} : vector<8x64xbf16>, vector<64x64xbf16>, vector<8x64xf32> -> vector<8x64xf32>
      %169 = arith.addf %168, %20 : vector<8x64xf32>
      %170 = vector.broadcast %36 : f32 to vector<8x64xf32>
      %171 = arith.mulf %170, %169 : vector<8x64xf32>
      %172 = arith.addf %151, %171 : vector<8x64xf32>
      %173 = math.tanh %172 : vector<8x64xf32>
      %174 = arith.addf %159, %166 : vector<8x64xf32>
      %cst_52 = arith.constant 2.000000e+00 : f32
      %175 = vector.broadcast %cst_52 : f32 to vector<8x64xf32>
      %176 = arith.mulf %175, %174 : vector<8x64xf32>
      %177 = arith.addf %152, %176 : vector<8x64xf32>
      %178 = arith.addf %177, %173 : vector<8x64xf32>
      %179 = arith.truncf %178 : vector<8x64xf32> to vector<8x64xbf16>
      %cst_53 = arith.constant dense<0.000000e+00> : vector<8x32xf32>
      %180 = tpu.matmul %179, %3, %cst_53 {dimension_numbers = #tpu.dot_dimension_numbers<[1], [0], [0], [1], [0, 0, 1, 1], [], []>} : vector<8x64xbf16>, vector<64x32xbf16>, vector<8x32xf32> -> vector<8x32xf32>
      %181 = vector.broadcast %38 : f32 to vector<8x32xf32>
      %182 = arith.mulf %181, %180 : vector<8x32xf32>
      %183 = arith.addf %148, %182 : vector<8x32xf32>
      %184 = arith.addf %183, %40 : vector<8x32xf32>
      %c4_i32 = arith.constant 4 : i32
      %185 = arith.truncf %184 : vector<8x32xf32> to vector<8x32xbf16>
      %cst_54 = arith.constant dense<0.000000e+00> : vector<8x64xf32>
      %186 = tpu.matmul %185, %2, %cst_54 {dimension_numbers = #tpu.dot_dimension_numbers<[1], [0], [0], [1], [0, 0, 1, 1], [], []>} : vector<8x32xbf16>, vector<32x64xbf16>, vector<8x64xf32> -> vector<8x64xf32>
      %187 = arith.addf %186, %10 : vector<8x64xf32>
      %188 = math.tanh %187 : vector<8x64xf32>
      %189 = arith.truncf %188 : vector<8x64xf32> to vector<8x64xbf16>
      %cst_55 = arith.constant dense<0.000000e+00> : vector<8x64xf32>
      %190 = tpu.matmul %189, %7, %cst_55 {dimension_numbers = #tpu.dot_dimension_numbers<[1], [0], [0], [1], [0, 0, 1, 1], [], []>} : vector<8x64xbf16>, vector<64x64xbf16>, vector<8x64xf32> -> vector<8x64xf32>
      %191 = arith.addf %190, %20 : vector<8x64xf32>
      %192 = vector.broadcast %37 : f32 to vector<8x64xf32>
      %193 = arith.mulf %192, %191 : vector<8x64xf32>
      %194 = arith.addf %187, %193 : vector<8x64xf32>
      %195 = math.tanh %194 : vector<8x64xf32>
      %196 = arith.truncf %195 : vector<8x64xf32> to vector<8x64xbf16>
      %cst_56 = arith.constant dense<0.000000e+00> : vector<8x64xf32>
      %197 = tpu.matmul %196, %7, %cst_56 {dimension_numbers = #tpu.dot_dimension_numbers<[1], [0], [0], [1], [0, 0, 1, 1], [], []>} : vector<8x64xbf16>, vector<64x64xbf16>, vector<8x64xf32> -> vector<8x64xf32>
      %198 = arith.addf %197, %20 : vector<8x64xf32>
      %199 = vector.broadcast %37 : f32 to vector<8x64xf32>
      %200 = arith.mulf %199, %198 : vector<8x64xf32>
      %201 = arith.addf %187, %200 : vector<8x64xf32>
      %202 = math.tanh %201 : vector<8x64xf32>
      %203 = arith.truncf %202 : vector<8x64xf32> to vector<8x64xbf16>
      %cst_57 = arith.constant dense<0.000000e+00> : vector<8x64xf32>
      %204 = tpu.matmul %203, %7, %cst_57 {dimension_numbers = #tpu.dot_dimension_numbers<[1], [0], [0], [1], [0, 0, 1, 1], [], []>} : vector<8x64xbf16>, vector<64x64xbf16>, vector<8x64xf32> -> vector<8x64xf32>
      %205 = arith.addf %204, %20 : vector<8x64xf32>
      %206 = vector.broadcast %36 : f32 to vector<8x64xf32>
      %207 = arith.mulf %206, %205 : vector<8x64xf32>
      %208 = arith.addf %187, %207 : vector<8x64xf32>
      %209 = math.tanh %208 : vector<8x64xf32>
      %210 = arith.addf %195, %202 : vector<8x64xf32>
      %cst_58 = arith.constant 2.000000e+00 : f32
      %211 = vector.broadcast %cst_58 : f32 to vector<8x64xf32>
      %212 = arith.mulf %211, %210 : vector<8x64xf32>
      %213 = arith.addf %188, %212 : vector<8x64xf32>
      %214 = arith.addf %213, %209 : vector<8x64xf32>
      %215 = arith.truncf %214 : vector<8x64xf32> to vector<8x64xbf16>
      %cst_59 = arith.constant dense<0.000000e+00> : vector<8x32xf32>
      %216 = tpu.matmul %215, %3, %cst_59 {dimension_numbers = #tpu.dot_dimension_numbers<[1], [0], [0], [1], [0, 0, 1, 1], [], []>} : vector<8x64xbf16>, vector<64x32xbf16>, vector<8x32xf32> -> vector<8x32xf32>
      %217 = vector.broadcast %38 : f32 to vector<8x32xf32>
      %218 = arith.mulf %217, %216 : vector<8x32xf32>
      %219 = arith.addf %184, %218 : vector<8x32xf32>
      %220 = arith.addf %219, %40 : vector<8x32xf32>
      %c5_i32 = arith.constant 5 : i32
      %221 = arith.truncf %220 : vector<8x32xf32> to vector<8x32xbf16>
      %cst_60 = arith.constant dense<0.000000e+00> : vector<8x64xf32>
      %222 = tpu.matmul %221, %2, %cst_60 {dimension_numbers = #tpu.dot_dimension_numbers<[1], [0], [0], [1], [0, 0, 1, 1], [], []>} : vector<8x32xbf16>, vector<32x64xbf16>, vector<8x64xf32> -> vector<8x64xf32>
      %223 = arith.addf %222, %10 : vector<8x64xf32>
      %224 = math.tanh %223 : vector<8x64xf32>
      %225 = arith.truncf %224 : vector<8x64xf32> to vector<8x64xbf16>
      %cst_61 = arith.constant dense<0.000000e+00> : vector<8x64xf32>
      %226 = tpu.matmul %225, %7, %cst_61 {dimension_numbers = #tpu.dot_dimension_numbers<[1], [0], [0], [1], [0, 0, 1, 1], [], []>} : vector<8x64xbf16>, vector<64x64xbf16>, vector<8x64xf32> -> vector<8x64xf32>
      %227 = arith.addf %226, %20 : vector<8x64xf32>
      %228 = vector.broadcast %37 : f32 to vector<8x64xf32>
      %229 = arith.mulf %228, %227 : vector<8x64xf32>
      %230 = arith.addf %223, %229 : vector<8x64xf32>
      %231 = math.tanh %230 : vector<8x64xf32>
      %232 = arith.truncf %231 : vector<8x64xf32> to vector<8x64xbf16>
      %cst_62 = arith.constant dense<0.000000e+00> : vector<8x64xf32>
      %233 = tpu.matmul %232, %7, %cst_62 {dimension_numbers = #tpu.dot_dimension_numbers<[1], [0], [0], [1], [0, 0, 1, 1], [], []>} : vector<8x64xbf16>, vector<64x64xbf16>, vector<8x64xf32> -> vector<8x64xf32>
      %234 = arith.addf %233, %20 : vector<8x64xf32>
      %235 = vector.broadcast %37 : f32 to vector<8x64xf32>
      %236 = arith.mulf %235, %234 : vector<8x64xf32>
      %237 = arith.addf %223, %236 : vector<8x64xf32>
      %238 = math.tanh %237 : vector<8x64xf32>
      %239 = arith.truncf %238 : vector<8x64xf32> to vector<8x64xbf16>
      %cst_63 = arith.constant dense<0.000000e+00> : vector<8x64xf32>
      %240 = tpu.matmul %239, %7, %cst_63 {dimension_numbers = #tpu.dot_dimension_numbers<[1], [0], [0], [1], [0, 0, 1, 1], [], []>} : vector<8x64xbf16>, vector<64x64xbf16>, vector<8x64xf32> -> vector<8x64xf32>
      %241 = arith.addf %240, %20 : vector<8x64xf32>
      %242 = vector.broadcast %36 : f32 to vector<8x64xf32>
      %243 = arith.mulf %242, %241 : vector<8x64xf32>
      %244 = arith.addf %223, %243 : vector<8x64xf32>
      %245 = math.tanh %244 : vector<8x64xf32>
      %246 = arith.addf %231, %238 : vector<8x64xf32>
      %cst_64 = arith.constant 2.000000e+00 : f32
      %247 = vector.broadcast %cst_64 : f32 to vector<8x64xf32>
      %248 = arith.mulf %247, %246 : vector<8x64xf32>
      %249 = arith.addf %224, %248 : vector<8x64xf32>
      %250 = arith.addf %249, %245 : vector<8x64xf32>
      %251 = arith.truncf %250 : vector<8x64xf32> to vector<8x64xbf16>
      %cst_65 = arith.constant dense<0.000000e+00> : vector<8x32xf32>
      %252 = tpu.matmul %251, %3, %cst_65 {dimension_numbers = #tpu.dot_dimension_numbers<[1], [0], [0], [1], [0, 0, 1, 1], [], []>} : vector<8x64xbf16>, vector<64x32xbf16>, vector<8x32xf32> -> vector<8x32xf32>
      %253 = vector.broadcast %38 : f32 to vector<8x32xf32>
      %254 = arith.mulf %253, %252 : vector<8x32xf32>
      %255 = arith.addf %220, %254 : vector<8x32xf32>
      %256 = arith.addf %255, %40 : vector<8x32xf32>
      %c6_i32 = arith.constant 6 : i32
      %257 = arith.truncf %256 : vector<8x32xf32> to vector<8x32xbf16>
      %cst_66 = arith.constant dense<0.000000e+00> : vector<8x64xf32>
      %258 = tpu.matmul %257, %2, %cst_66 {dimension_numbers = #tpu.dot_dimension_numbers<[1], [0], [0], [1], [0, 0, 1, 1], [], []>} : vector<8x32xbf16>, vector<32x64xbf16>, vector<8x64xf32> -> vector<8x64xf32>
      %259 = arith.addf %258, %10 : vector<8x64xf32>
      %260 = math.tanh %259 : vector<8x64xf32>
      %261 = arith.truncf %260 : vector<8x64xf32> to vector<8x64xbf16>
      %cst_67 = arith.constant dense<0.000000e+00> : vector<8x64xf32>
      %262 = tpu.matmul %261, %7, %cst_67 {dimension_numbers = #tpu.dot_dimension_numbers<[1], [0], [0], [1], [0, 0, 1, 1], [], []>} : vector<8x64xbf16>, vector<64x64xbf16>, vector<8x64xf32> -> vector<8x64xf32>
      %263 = arith.addf %262, %20 : vector<8x64xf32>
      %264 = vector.broadcast %37 : f32 to vector<8x64xf32>
      %265 = arith.mulf %264, %263 : vector<8x64xf32>
      %266 = arith.addf %259, %265 : vector<8x64xf32>
      %267 = math.tanh %266 : vector<8x64xf32>
      %268 = arith.truncf %267 : vector<8x64xf32> to vector<8x64xbf16>
      %cst_68 = arith.constant dense<0.000000e+00> : vector<8x64xf32>
      %269 = tpu.matmul %268, %7, %cst_68 {dimension_numbers = #tpu.dot_dimension_numbers<[1], [0], [0], [1], [0, 0, 1, 1], [], []>} : vector<8x64xbf16>, vector<64x64xbf16>, vector<8x64xf32> -> vector<8x64xf32>
      %270 = arith.addf %269, %20 : vector<8x64xf32>
      %271 = vector.broadcast %37 : f32 to vector<8x64xf32>
      %272 = arith.mulf %271, %270 : vector<8x64xf32>
      %273 = arith.addf %259, %272 : vector<8x64xf32>
      %274 = math.tanh %273 : vector<8x64xf32>
      %275 = arith.truncf %274 : vector<8x64xf32> to vector<8x64xbf16>
      %cst_69 = arith.constant dense<0.000000e+00> : vector<8x64xf32>
      %276 = tpu.matmul %275, %7, %cst_69 {dimension_numbers = #tpu.dot_dimension_numbers<[1], [0], [0], [1], [0, 0, 1, 1], [], []>} : vector<8x64xbf16>, vector<64x64xbf16>, vector<8x64xf32> -> vector<8x64xf32>
      %277 = arith.addf %276, %20 : vector<8x64xf32>
      %278 = vector.broadcast %36 : f32 to vector<8x64xf32>
      %279 = arith.mulf %278, %277 : vector<8x64xf32>
      %280 = arith.addf %259, %279 : vector<8x64xf32>
      %281 = math.tanh %280 : vector<8x64xf32>
      %282 = arith.addf %267, %274 : vector<8x64xf32>
      %cst_70 = arith.constant 2.000000e+00 : f32
      %283 = vector.broadcast %cst_70 : f32 to vector<8x64xf32>
      %284 = arith.mulf %283, %282 : vector<8x64xf32>
      %285 = arith.addf %260, %284 : vector<8x64xf32>
      %286 = arith.addf %285, %281 : vector<8x64xf32>
      %287 = arith.truncf %286 : vector<8x64xf32> to vector<8x64xbf16>
      %cst_71 = arith.constant dense<0.000000e+00> : vector<8x32xf32>
      %288 = tpu.matmul %287, %3, %cst_71 {dimension_numbers = #tpu.dot_dimension_numbers<[1], [0], [0], [1], [0, 0, 1, 1], [], []>} : vector<8x64xbf16>, vector<64x32xbf16>, vector<8x32xf32> -> vector<8x32xf32>
      %289 = vector.broadcast %38 : f32 to vector<8x32xf32>
      %290 = arith.mulf %289, %288 : vector<8x32xf32>
      %291 = arith.addf %256, %290 : vector<8x32xf32>
      %292 = arith.addf %291, %40 : vector<8x32xf32>
      %c7_i32_72 = arith.constant 7 : i32
      %293 = arith.truncf %292 : vector<8x32xf32> to vector<8x32xbf16>
      %cst_73 = arith.constant dense<0.000000e+00> : vector<8x64xf32>
      %294 = tpu.matmul %293, %2, %cst_73 {dimension_numbers = #tpu.dot_dimension_numbers<[1], [0], [0], [1], [0, 0, 1, 1], [], []>} : vector<8x32xbf16>, vector<32x64xbf16>, vector<8x64xf32> -> vector<8x64xf32>
      %295 = arith.addf %294, %10 : vector<8x64xf32>
      %296 = math.tanh %295 : vector<8x64xf32>
      %297 = arith.truncf %296 : vector<8x64xf32> to vector<8x64xbf16>
      %cst_74 = arith.constant dense<0.000000e+00> : vector<8x64xf32>
      %298 = tpu.matmul %297, %7, %cst_74 {dimension_numbers = #tpu.dot_dimension_numbers<[1], [0], [0], [1], [0, 0, 1, 1], [], []>} : vector<8x64xbf16>, vector<64x64xbf16>, vector<8x64xf32> -> vector<8x64xf32>
      %299 = arith.addf %298, %20 : vector<8x64xf32>
      %300 = vector.broadcast %37 : f32 to vector<8x64xf32>
      %301 = arith.mulf %300, %299 : vector<8x64xf32>
      %302 = arith.addf %295, %301 : vector<8x64xf32>
      %303 = math.tanh %302 : vector<8x64xf32>
      %304 = arith.truncf %303 : vector<8x64xf32> to vector<8x64xbf16>
      %cst_75 = arith.constant dense<0.000000e+00> : vector<8x64xf32>
      %305 = tpu.matmul %304, %7, %cst_75 {dimension_numbers = #tpu.dot_dimension_numbers<[1], [0], [0], [1], [0, 0, 1, 1], [], []>} : vector<8x64xbf16>, vector<64x64xbf16>, vector<8x64xf32> -> vector<8x64xf32>
      %306 = arith.addf %305, %20 : vector<8x64xf32>
      %307 = vector.broadcast %37 : f32 to vector<8x64xf32>
      %308 = arith.mulf %307, %306 : vector<8x64xf32>
      %309 = arith.addf %295, %308 : vector<8x64xf32>
      %310 = math.tanh %309 : vector<8x64xf32>
      %311 = arith.truncf %310 : vector<8x64xf32> to vector<8x64xbf16>
      %cst_76 = arith.constant dense<0.000000e+00> : vector<8x64xf32>
      %312 = tpu.matmul %311, %7, %cst_76 {dimension_numbers = #tpu.dot_dimension_numbers<[1], [0], [0], [1], [0, 0, 1, 1], [], []>} : vector<8x64xbf16>, vector<64x64xbf16>, vector<8x64xf32> -> vector<8x64xf32>
      %313 = arith.addf %312, %20 : vector<8x64xf32>
      %314 = vector.broadcast %36 : f32 to vector<8x64xf32>
      %315 = arith.mulf %314, %313 : vector<8x64xf32>
      %316 = arith.addf %295, %315 : vector<8x64xf32>
      %317 = math.tanh %316 : vector<8x64xf32>
      %318 = arith.addf %303, %310 : vector<8x64xf32>
      %cst_77 = arith.constant 2.000000e+00 : f32
      %319 = vector.broadcast %cst_77 : f32 to vector<8x64xf32>
      %320 = arith.mulf %319, %318 : vector<8x64xf32>
      %321 = arith.addf %296, %320 : vector<8x64xf32>
      %322 = arith.addf %321, %317 : vector<8x64xf32>
      %323 = arith.truncf %322 : vector<8x64xf32> to vector<8x64xbf16>
      %cst_78 = arith.constant dense<0.000000e+00> : vector<8x32xf32>
      %324 = tpu.matmul %323, %3, %cst_78 {dimension_numbers = #tpu.dot_dimension_numbers<[1], [0], [0], [1], [0, 0, 1, 1], [], []>} : vector<8x64xbf16>, vector<64x32xbf16>, vector<8x32xf32> -> vector<8x32xf32>
      %325 = vector.broadcast %38 : f32 to vector<8x32xf32>
      %326 = arith.mulf %325, %324 : vector<8x32xf32>
      %327 = arith.addf %292, %326 : vector<8x32xf32>
      %328 = arith.addf %327, %40 : vector<8x32xf32>
      %c1_i32_79 = arith.constant 1 : i32
      %329 = arith.addi %arg10, %c1_i32_79 : i32
      %c8_i32 = arith.constant 8 : i32
      %330 = arith.muli %329, %c8_i32 : i32
      %331 = tpu.assume_multiple %330, 8 : i32
      %332 = arith.index_cast %331 : i32 to index
      %c0_80 = arith.constant 0 : index
      %333 = vector.load %arg9[%332, %c0_80] : memref<64x32xf32, #tpu.memory_space<vmem>>, vector<8x32xf32>
      tpu.vector_store %arg9[%332, %c0_80], %328 {strides = array<i32>} : memref<64x32xf32, #tpu.memory_space<vmem>>, vector<8x32xf32>,
      scf.yield %328 : vector<8x32xf32>
    }
    %c7_i32_18 = arith.constant 7 : i32
    %c0_19 = arith.constant 0 : index
    %c0_20 = arith.constant 0 : index
    %25 = vector.load %arg9[%c0_19, %c0_20] : memref<64x32xf32, #tpu.memory_space<vmem>>, vector<64x32xf32>
    %26 = arith.truncf %25 : vector<64x32xf32> to vector<64x32xbf16>
    %cst_21 = arith.constant dense<0.000000e+00> : vector<64x16xf32>
    %27 = tpu.matmul %26, %5, %cst_21 {dimension_numbers = #tpu.dot_dimension_numbers<[1], [0], [0], [1], [0, 0, 1, 1], [], []>} : vector<64x32xbf16>, vector<32x16xbf16>, vector<64x16xf32> -> vector<64x16xf32>
    %28 = arith.addf %27, %16 : vector<64x16xf32>
    %c0_22 = arith.constant 0 : index
    %c0_23 = arith.constant 0 : index
    %29 = vector.load %arg8[%c0_22, %c0_23] : memref<64x16xf32, #tpu.memory_space<vmem>>, vector<64x16xf32>
    tpu.vector_store %arg8[%c0_22, %c0_23], %28 {strides = array<i32>} : memref<64x16xf32, #tpu.memory_space<vmem>>, vector<64x16xf32>,
    return
  }
}

</mosaic_0001>

<llo_original>
// kernel: tpu_custom_call.1
$region0: #{tpu_custom_call.1}
  #allocation0 [shape = 'u32[]', space=smem, size = 0x4, offset = 0x4, fixed_abs, tag = 'smem constant byte address 0x4 - core index']
  #allocation1 [shape = 'u32[144,128]{1,0:T(1,128)}', space=vmem, size = 0x12000, scoped, tag = 'internal scratch']
  #allocation2 [shape = 'f32[64,32]{1,0:T(8,128)}', space=vmem, size = 0x8000, scoped, tag = 'scratch operand']
  %s0 = inlined_call_operand.vmem [shape: f32[8], index: 0, kind: input, shape index: {}]
  %s1 = inlined_call_operand.vmem [shape: f32[8,32], index: 1, kind: input, shape index: {}]
  %s2 = inlined_call_operand.vmem [shape: f32[32,64], index: 2, kind: input, shape index: {}]
  %s3 = inlined_call_operand.vmem [shape: f32[1,64], index: 3, kind: input, shape index: {}]
  %s4 = inlined_call_operand.vmem [shape: f32[64,32], index: 4, kind: input, shape index: {}]
  %s5 = inlined_call_operand.vmem [shape: f32[1,32], index: 5, kind: input, shape index: {}]
  %s6 = inlined_call_operand.vmem [shape: f32[32,16], index: 6, kind: input, shape index: {}]
  %s7 = inlined_call_operand.vmem [shape: f32[1,16], index: 7, kind: input, shape index: {}]
  %s8 = inlined_call_operand.vmem [shape: f32[64,16], index: 8, kind: output, shape index: {}]
  %s9 = sld [smem:[#allocation0]]
  $region53: #{tpu_custom_call.1} parent=0
    _
  %s11 = ssub.s32 1, %s9
  %s12 = scalar_select 0, %s11, %s9
  $region1: #{tpu_custom_call.1} parent=0
    #allocation3 [shape = 'u8[512]{0}', space=smem, size = 0x200, scoped, tag = 'input window, operand 0, single buffered']
    #allocation4 [shape = 's32[1]{0}', space=sflag, size = 0x4, scoped, tag = 'scoped memory for tpu_custom_call.1']
    %13 = vsyncpa [#allocation4], 0
    // Predicated region
    $region2: #{tpu_custom_call.1} parent=1 // pred_check
      _
    $region3: #{tpu_custom_call.1} parent=1 // pred_check_branch
      %15 = sbr.rel (0) target = $region5
    $region4: #{tpu_custom_call.1} parent=1 // pred_region
      %s17 = ssub.s32 16, 16
      %18 = vsyncadd [#allocation4], %s17
      %s20 = sshll.u32 %s0, 4
      %s21 = int_to_ptr.vmem [resolvable:$true] %s20
      %23 = dma.vmem_to_smem %s21, 16, [#allocation3], [#allocation4]
    $region5: #{tpu_custom_call.1} parent=1 // pred_fallthru
      _
    // Predicated region
    $region6: #{tpu_custom_call.1} parent=1 // pred_check
      _
    $region7: #{tpu_custom_call.1} parent=1 // pred_check_branch
      %25 = sbr.rel (0) target = $region9
    $region8: #{tpu_custom_call.1} parent=1 // pred_region
      _
    $region9: #{tpu_custom_call.1} parent=1 // pred_fallthru
      _
    // Predicated region
    $region10: #{tpu_custom_call.1} parent=1 // pred_check
      _
    $region11: #{tpu_custom_call.1} parent=1 // pred_check_branch
      %27 = sbr.rel (0) target = $region13
    $region12: #{tpu_custom_call.1} parent=1 // pred_region
      _
    $region13: #{tpu_custom_call.1} parent=1 // pred_fallthru
      _
    // Predicated region
    $region14: #{tpu_custom_call.1} parent=1 // pred_check
      _
    $region15: #{tpu_custom_call.1} parent=1 // pred_check_branch
      %29 = sbr.rel (0) target = $region17
    $region16: #{tpu_custom_call.1} parent=1 // pred_region
      _
    $region17: #{tpu_custom_call.1} parent=1 // pred_fallthru
      _
    // Predicated region
    $region18: #{tpu_custom_call.1} parent=1 // pred_check
      _
    $region19: #{tpu_custom_call.1} parent=1 // pred_check_branch
      %31 = sbr.rel (0) target = $region21
    $region20: #{tpu_custom_call.1} parent=1 // pred_region
      _
    $region21: #{tpu_custom_call.1} parent=1 // pred_fallthru
      _
    // Predicated region
    $region22: #{tpu_custom_call.1} parent=1 // pred_check
      _
    $region23: #{tpu_custom_call.1} parent=1 // pred_check_branch
      %33 = sbr.rel (0) target = $region25
    $region24: #{tpu_custom_call.1} parent=1 // pred_region
      _
    $region25: #{tpu_custom_call.1} parent=1 // pred_fallthru
      _
    // Predicated region
    $region26: #{tpu_custom_call.1} parent=1 // pred_check
      _
    $region27: #{tpu_custom_call.1} parent=1 // pred_check_branch
      %35 = sbr.rel (0) target = $region29
    $region28: #{tpu_custom_call.1} parent=1 // pred_region
      _
    $region29: #{tpu_custom_call.1} parent=1 // pred_fallthru
      _
    // Predicated region
    $region30: #{tpu_custom_call.1} parent=1 // pred_check
      _
    $region31: #{tpu_custom_call.1} parent=1 // pred_check_branch
      %37 = sbr.rel (0) target = $region33
    $region32: #{tpu_custom_call.1} parent=1 // pred_region
      _
    $region33: #{tpu_custom_call.1} parent=1 // pred_fallthru
      _
    // Predicated region
    $region34: #{tpu_custom_call.1} parent=1 // pred_check
      _
    $region35: #{tpu_custom_call.1} parent=1 // pred_check_branch
      %39 = sbr.rel (0) target = $region37
    $region36: #{tpu_custom_call.1} parent=1 // pred_region
      %40 = dma.done [#allocation4], 16
    $region37: #{tpu_custom_call.1} parent=1 // pred_fallthru
      _
    %41 = sfence
    %v43 = vld [vmem:[%s2] sm:$0xff]
    %v44 = vld [vmem:[%s2 + $0x8] sm:$0xff]
    %v45 = vld [vmem:[%s2 + $0x10] sm:$0xff]
    %v46 = vld [vmem:[%s2 + $0x18] sm:$0xff]
    %v47 = vld [vmem:[%s4] sm:$0xff]
    %v48 = vld [vmem:[%s4 + $0x8] sm:$0xff]
    %v49 = vld [vmem:[%s4 + $0x10] sm:$0xff]
    %v50 = vld [vmem:[%s4 + $0x18] sm:$0xff]
    %v51 = vld [vmem:[%s4 + $0x20] sm:$0xff]
    %v52 = vld [vmem:[%s4 + $0x28] sm:$0xff]
    %v53 = vld [vmem:[%s4 + $0x30] sm:$0xff]
    %v54 = vld [vmem:[%s4 + $0x38] sm:$0xff]
    %v55 = vpack.c.bf16 %v44, %v43
    %v56 = vpack.c.bf16 %v46, %v45
    %v57 = vpack.c.bf16 %v48, %v47
    %v58 = vpack.c.bf16 %v50, %v49
    %v59 = vpack.c.bf16 %v52, %v51
    %v60 = vpack.c.bf16 %v54, %v53
    %v61 = vld [vmem:[%s6] sm:$0xff]
    %v62 = vld [vmem:[%s6 + $0x8] sm:$0xff]
    %v63 = vld [vmem:[%s6 + $0x10] sm:$0xff]
    %v64 = vld [vmem:[%s6 + $0x18] sm:$0xff]
    %v65 = vpack.c.bf16 %v62, %v61
    %v66 = vpack.c.bf16 %v64, %v63
    %vm67 = vcmask 261120
    %v69 = vsel %vm67, %v47, 0
    %v72 = vsel %vm67, %v48, 0
    %v75 = vsel %vm67, %v49, 0
    %v78 = vsel %vm67, %v50, 0
    %v81 = vsel %vm67, %v51, 0
    %v84 = vsel %vm67, %v52, 0
    %v87 = vsel %vm67, %v53, 0
    %v90 = vsel %vm67, %v54, 0
    %92 = vmatprep.subr.mxu0 0.0
    %93 = vmatpush1.msra.mxu0 %v43
    %94 = vmatprep.subr.mxu0 0.0
    %95 = vmatpush1.msra.mxu0 %v44
    %96 = vmatprep.subr.mxu0 0.0
    %97 = vmatpush1.msra.mxu0 %v45
    %98 = vmatprep.subr.mxu0 0.0
    %99 = vmatpush1.msra.mxu0 %v46
    %100 = vmatprep.subr.mxu0 0.0
    %101 = vmatpush1.msra.mxu0 0.0
    %102 = vmatprep.subr.mxu0 0.0
    %103 = vmatpush1.msra.mxu0 0.0
    %104 = vmatprep.subr.mxu0 0.0
    %105 = vmatpush1.msra.mxu0 0.0
    %106 = vmatprep.subr.mxu0 0.0
    %107 = vmatpush1.msra.mxu0 0.0
    %108 = vmatprep.subr.mxu0 0.0
    %109 = vmatpush1.msra.mxu0 0.0
    %110 = vmatprep.subr.mxu0 0.0
    %111 = vmatpush1.msra.mxu0 0.0
    %112 = vmatprep.subr.mxu0 0.0
    %113 = vmatpush1.msra.mxu0 0.0
    %114 = vmatprep.subr.mxu0 0.0
    %115 = vmatpush1.msra.mxu0 0.0
    %116 = vmatprep.subr.mxu0 0.0
    %117 = vmatpush1.msra.mxu0 0.0
    %118 = vmatprep.subr.mxu0 0.0
    %119 = vmatpush1.msra.mxu0 0.0
    %120 = vmatprep.subr.mxu0 0.0
    %121 = vmatpush1.msra.mxu0 0.0
    %122 = vmatprep.subr.mxu0 0.0
    %123 = vmatpush1.msra.mxu0 0.0
    %124 = vmatprep.subr.mxu0 0.0
    %125 = vmatpush1.msra.mxu0 0.0
    %126 = vmatprep.subr.mxu0 0.0
    %127 = vmatpush1.msra.mxu0 0.0
    %128 = vmatprep.subr.mxu0 0.0
    %129 = vmatpush1.msra.mxu0 0.0
    %130 = vmatprep.subr.mxu0 0.0
    %131 = vmatpush1.msra.mxu0 0.0
    %132 = vmatprep.subr.mxu0 0.0
    %133 = vmatpush1.msra.mxu0 0.0
    %134 = vmatprep.subr.mxu0 0.0
    %135 = vmatpush1.msra.mxu0 0.0
    %136 = vmatprep.subr.mxu0 0.0
    %137 = vmatpush1.msra.mxu0 0.0
    %138 = vmatprep.subr.mxu0 0.0
    %139 = vmatpush1.msra.mxu0 0.0
    %140 = vmatprep.subr.mxu0 0.0
    %141 = vmatpush1.msra.mxu0 0.0
    %142 = vmatprep.subr.mxu0 0.0
    %143 = vmatpush1.msra.mxu0 0.0
    %144 = vmatprep.subr.mxu0 0.0
    %145 = vmatpush1.msra.mxu0 0.0
    %146 = vmatprep.subr.mxu0 0.0
    %147 = vmatpush1.msra.mxu0 0.0
    %148 = vmatprep.subr.mxu0 0.0
    %149 = vmatpush1.msra.mxu0 0.0
    %150 = vmatprep.subr.mxu0 0.0
    %151 = vmatpush1.msra.mxu0 0.0
    %152 = vmatprep.subr.mxu0 0.0
    %153 = vmatpush1.msra.mxu0 0.0
    %154 = vmatprep.subr.mxu0 0.0
    %155 = vmatpush1.msra.mxu0 0.0
    %156 = vmatprep.mubr.f32.mxu0 0.0
    %157 = vmatmul.mubr.f32.gmra.mrb[0].mxu0 %v69
    %v158 = vpop.f32.mrb[0].mxu0
    %v159 = vadd.f32 0.0, %v158
    %v160 = vpop.f32.mrb[0].mxu0
    %161 = vmatprep.mubr.f32.mxu0 0.0
    %162 = vmatmul.mubr.f32.gmra.mrb[0].mxu0 %v72
    %v163 = vpop.f32.mrb[0].mxu0
    %v164 = vadd.f32 0.0, %v163
    %v165 = vpop.f32.mrb[0].mxu0
    %166 = vmatprep.mubr.f32.mxu0 0.0
    %167 = vmatmul.mubr.f32.gmra.mrb[0].mxu0 %v75
    %v168 = vpop.f32.mrb[0].mxu0
    %v169 = vadd.f32 0.0, %v168
    %v170 = vpop.f32.mrb[0].mxu0
    %171 = vmatprep.mubr.f32.mxu0 0.0
    %172 = vmatmul.mubr.f32.gmra.mrb[0].mxu0 %v78
    %v173 = vpop.f32.mrb[0].mxu0
    %v174 = vadd.f32 0.0, %v173
    %v175 = vpop.f32.mrb[0].mxu0
    %176 = vmatprep.mubr.f32.mxu0 0.0
    %177 = vmatmul.mubr.f32.gmra.mrb[0].mxu0 %v81
    %v178 = vpop.f32.mrb[0].mxu0
    %v179 = vadd.f32 0.0, %v178
    %v180 = vpop.f32.mrb[0].mxu0
    %181 = vmatprep.mubr.f32.mxu0 0.0
    %182 = vmatmul.mubr.f32.gmra.mrb[0].mxu0 %v84
    %v183 = vpop.f32.mrb[0].mxu0
    %v184 = vadd.f32 0.0, %v183
    %v185 = vpop.f32.mrb[0].mxu0
    %186 = vmatprep.mubr.f32.mxu0 0.0
    %187 = vmatmul.mubr.f32.gmra.mrb[0].mxu0 %v87
    %v188 = vpop.f32.mrb[0].mxu0
    %v189 = vadd.f32 0.0, %v188
    %v190 = vpop.f32.mrb[0].mxu0
    %191 = vmatprep.mubr.f32.mxu0 0.0
    %192 = vmatmul.mubr.f32.gmra.mrb[0].mxu0 %v90
    %v193 = vpop.f32.mrb[0].mxu0
    %v194 = vadd.f32 0.0, %v193
    %v195 = vpop.f32.mrb[0].mxu0
    %196 = vdwg.mxu0
    %v197 = vpack.c.bf16 %v164, %v159
    %v198 = vpack.c.bf16 %v174, %v169
    %v199 = vpack.c.bf16 %v184, %v179
    %v200 = vpack.c.bf16 %v194, %v189
    %v201 = vld [vmem:[%s3] sm:$0x1]
    %v203 = vlaneseq
    %v204 = vshrl.u32 %v203, 7
    %v205 = vsub.s32 0, %v204
    %v206 = vrot.slane %v201, %v205
    %v208 = vld [vmem:[%s5] sm:$0x1]
    %v210 = vlaneseq
    %v211 = vshrl.u32 %v210, 7
    %v212 = vsub.s32 0, %v211
    %v213 = vrot.slane %v208, %v212
    %v215 = vld [vmem:[%s7] sm:$0x1]
    %v217 = vlaneseq
    %v218 = vshrl.u32 %v217, 7
    %v219 = vsub.s32 0, %v218
    %v220 = vrot.slane %v215, %v219
    %v222 = vsel %vm67, %v208, 0
    %224 = vmatprep.subr.mxu0 0.0
    %225 = vmatpush1.msra.mxu0 %v43
    %226 = vmatprep.subr.mxu0 0.0
    %227 = vmatpush1.msra.mxu0 %v44
    %228 = vmatprep.subr.mxu0 0.0
    %229 = vmatpush1.msra.mxu0 %v45
    %230 = vmatprep.subr.mxu0 0.0
    %231 = vmatpush1.msra.mxu0 %v46
    %232 = vmatprep.subr.mxu0 0.0
    %233 = vmatpush1.msra.mxu0 0.0
    %234 = vmatprep.subr.mxu0 0.0
    %235 = vmatpush1.msra.mxu0 0.0
    %236 = vmatprep.subr.mxu0 0.0
    %237 = vmatpush1.msra.mxu0 0.0
    %238 = vmatprep.subr.mxu0 0.0
    %239 = vmatpush1.msra.mxu0 0.0
    %240 = vmatprep.subr.mxu0 0.0
    %241 = vmatpush1.msra.mxu0 0.0
    %242 = vmatprep.subr.mxu0 0.0
    %243 = vmatpush1.msra.mxu0 0.0
    %244 = vmatprep.subr.mxu0 0.0
    %245 = vmatpush1.msra.mxu0 0.0
    %246 = vmatprep.subr.mxu0 0.0
    %247 = vmatpush1.msra.mxu0 0.0
    %248 = vmatprep.subr.mxu0 0.0
    %249 = vmatpush1.msra.mxu0 0.0
    %250 = vmatprep.subr.mxu0 0.0
    %251 = vmatpush1.msra.mxu0 0.0
    %252 = vmatprep.subr.mxu0 0.0
    %253 = vmatpush1.msra.mxu0 0.0
    %254 = vmatprep.subr.mxu0 0.0
    %255 = vmatpush1.msra.mxu0 0.0
    %256 = vmatprep.subr.mxu0 0.0
    %257 = vmatpush1.msra.mxu0 0.0
    %258 = vmatprep.subr.mxu0 0.0
    %259 = vmatpush1.msra.mxu0 0.0
    %260 = vmatprep.subr.mxu0 0.0
    %261 = vmatpush1.msra.mxu0 0.0
    %262 = vmatprep.subr.mxu0 0.0
    %263 = vmatpush1.msra.mxu0 0.0
    %264 = vmatprep.subr.mxu0 0.0
    %265 = vmatpush1.msra.mxu0 0.0
    %266 = vmatprep.subr.mxu0 0.0
    %267 = vmatpush1.msra.mxu0 0.0
    %268 = vmatprep.subr.mxu0 0.0
    %269 = vmatpush1.msra.mxu0 0.0
    %270 = vmatprep.subr.mxu0 0.0
    %271 = vmatpush1.msra.mxu0 0.0
    %272 = vmatprep.subr.mxu0 0.0
    %273 = vmatpush1.msra.mxu0 0.0
    %274 = vmatprep.subr.mxu0 0.0
    %275 = vmatpush1.msra.mxu0 0.0
    %276 = vmatprep.subr.mxu0 0.0
    %277 = vmatpush1.msra.mxu0 0.0
    %278 = vmatprep.subr.mxu0 0.0
    %279 = vmatpush1.msra.mxu0 0.0
    %280 = vmatprep.subr.mxu0 0.0
    %281 = vmatpush1.msra.mxu0 0.0
    %282 = vmatprep.subr.mxu0 0.0
    %283 = vmatpush1.msra.mxu0 0.0
    %284 = vmatprep.subr.mxu0 0.0
    %285 = vmatpush1.msra.mxu0 0.0
    %286 = vmatprep.subr.mxu0 0.0
    %287 = vmatpush1.msra.mxu0 0.0
    %288 = vmatprep.mubr.f32.mxu0 0.0
    %289 = vmatmul.mubr.f32.gmra.mrb[0].mxu0 %v222
    %v290 = vpop.f32.mrb[0].mxu0
    %v291 = vadd.f32 0.0, %v290
    %v292 = vpop.f32.mrb[0].mxu0
    %293 = vdwg.mxu0
    %v294 = vlaneseq
    %v295 = vshrl.u32 %v294, 7
    %v296 = vsub.s32 0, %v295
    %v297 = vrot.slane %v291, %v296
    %v298 = vld [vmem:[%s1] sm:$0xff]
    %299 = vst.msk [vmem:[#allocation2] sm:$0xff] %vm67, %v298
    loop: start=0, step=1, limit=7
    $region38: #{tpu_custom_call.1} parent=1 // loop_pre_header
      _
    $region39: #{tpu_custom_call.1} parent=1 // loop_header
      %s301 = sphi 0, %s305
      %p302 = scmp.ge.s32.totalorder %s301, 7
      %v306 = vphi %v298, %v2218
    $region40: #{tpu_custom_call.1} parent=1 // loop_header_branch
      %304 = sbr.rel (%p302) target = $region44
    $region41: #{tpu_custom_call.1} parent=1 // loop_body
      %s307 = sadd.s32 %s301, 1
      %s308 = sld [smem:[#allocation3 + %s307]]
      %s309 = sld [smem:[#allocation3 + %s301]]
      %s310 = ssub.f32 %s308, %s309
      %v311 = vrcp.pop 8.0
      %s312 = vtos %v311
      %s313 = smul.f32 %s310, %s312
      %s314 = smul.f32 %s313, 0.5
      %v315 = vrcp.pop 6.0
      %s316 = vtos %v315
      %s317 = smul.f32 %s313, %s316
      %v318 = vstv %s313
      %v319 = vmul.f32 %v318, %v213
      %v320 = vpack.c.bf16 %v306, %v306
      %v322 = vsel %vm67, %v320, 0
      %324 = vmatprep.subr.bf16.mxu0 0
      %325 = vmatpush1.bf16.msra.mxu0 %v55
      %326 = vmatprep.subr.bf16.mxu0 0
      %327 = vmatpush1.bf16.msra.mxu0 %v56
      %328 = vmatprep.subr.bf16.mxu0 0
      %329 = vmatpush1.bf16.msra.mxu0 0
      %330 = vmatprep.subr.bf16.mxu0 0
      %331 = vmatpush1.bf16.msra.mxu0 0
      %332 = vmatprep.subr.bf16.mxu0 0
      %333 = vmatpush1.bf16.msra.mxu0 0
      %334 = vmatprep.subr.bf16.mxu0 0
      %335 = vmatpush1.bf16.msra.mxu0 0
      %336 = vmatprep.subr.bf16.mxu0 0
      %337 = vmatpush1.bf16.msra.mxu0 0
      %338 = vmatprep.subr.bf16.mxu0 0
      %339 = vmatpush1.bf16.msra.mxu0 0
      %340 = vmatprep.subr.bf16.mxu0 0
      %341 = vmatpush1.bf16.msra.mxu0 0
      %342 = vmatprep.subr.bf16.mxu0 0
      %343 = vmatpush1.bf16.msra.mxu0 0
      %344 = vmatprep.subr.bf16.mxu0 0
      %345 = vmatpush1.bf16.msra.mxu0 0
      %346 = vmatprep.subr.bf16.mxu0 0
      %347 = vmatpush1.bf16.msra.mxu0 0
      %348 = vmatprep.subr.bf16.mxu0 0
      %349 = vmatpush1.bf16.msra.mxu0 0
      %350 = vmatprep.subr.bf16.mxu0 0
      %351 = vmatpush1.bf16.msra.mxu0 0
      %352 = vmatprep.subr.bf16.mxu0 0
      %353 = vmatpush1.bf16.msra.mxu0 0
      %354 = vmatprep.subr.bf16.mxu0 0
      %355 = vmatpush1.bf16.msra.mxu0 0
      %356 = vmatprep.mubr.bf16.mxu0 0
      %357 = vmatmul.mubr.bf16.gmra.mrb[0].mxu0 %v322
      %v358 = vpop.f32.mrb[0].mxu0
      %v359 = vadd.f32 %v206, %v358
      %v360 = vpop.f32.mrb[0].mxu0
      %v361 = vpop.f32.mrb[0].mxu0
      %v362 = vpop.f32.mrb[0].mxu0
      %363 = vdwg.mxu0
      %v364 = vtanh.pop %v359
      %v365 = vpack.c.bf16 %v364, %v364
      %vm366 = vcmask 523264
      %v368 = vsel %vm366, %v365, 0
      %370 = vmatprep.subr.bf16.mxu0 0
      %371 = vmatpush1.bf16.msra.mxu0 %v197
      %372 = vmatprep.subr.bf16.mxu0 0
      %373 = vmatpush1.bf16.msra.mxu0 %v198
      %374 = vmatprep.subr.bf16.mxu0 0
      %375 = vmatpush1.bf16.msra.mxu0 %v199
      %376 = vmatprep.subr.bf16.mxu0 0
      %377 = vmatpush1.bf16.msra.mxu0 %v200
      %378 = vmatprep.subr.bf16.mxu0 0
      %379 = vmatpush1.bf16.msra.mxu0 0
      %380 = vmatprep.subr.bf16.mxu0 0
      %381 = vmatpush1.bf16.msra.mxu0 0
      %382 = vmatprep.subr.bf16.mxu0 0
      %383 = vmatpush1.bf16.msra.mxu0 0
      %384 = vmatprep.subr.bf16.mxu0 0
      %385 = vmatpush1.bf16.msra.mxu0 0
      %386 = vmatprep.subr.bf16.mxu0 0
      %387 = vmatpush1.bf16.msra.mxu0 0
      %388 = vmatprep.subr.bf16.mxu0 0
      %389 = vmatpush1.bf16.msra.mxu0 0
      %390 = vmatprep.subr.bf16.mxu0 0
      %391 = vmatpush1.bf16.msra.mxu0 0
      %392 = vmatprep.subr.bf16.mxu0 0
      %393 = vmatpush1.bf16.msra.mxu0 0
      %394 = vmatprep.subr.bf16.mxu0 0
      %395 = vmatpush1.bf16.msra.mxu0 0
      %396 = vmatprep.subr.bf16.mxu0 0
      %397 = vmatpush1.bf16.msra.mxu0 0
      %398 = vmatprep.subr.bf16.mxu0 0
      %399 = vmatpush1.bf16.msra.mxu0 0
      %400 = vmatprep.subr.bf16.mxu0 0
      %401 = vmatpush1.bf16.msra.mxu0 0
      %402 = vmatprep.mubr.bf16.mxu0 0
      %403 = vmatmul.mubr.bf16.gmra.mrb[0].mxu0 %v368
      %v404 = vpop.f32.mrb[0].mxu0
      %v405 = vadd.f32 %v297, %v404
      %v406 = vpop.f32.mrb[0].mxu0
      %v407 = vpop.f32.mrb[0].mxu0
      %v408 = vpop.f32.mrb[0].mxu0
      %409 = vdwg.mxu0
      %v410 = vstv %s314
      %v411 = vmul.f32 %v410, %v405
      %v412 = vadd.f32 %v359, %v411
      %v413 = vtanh.pop %v412
      %v414 = vpack.c.bf16 %v413, %v413
      %v416 = vsel %vm366, %v414, 0
      %418 = vmatprep.subr.bf16.mxu0 0
      %419 = vmatpush1.bf16.msra.mxu0 %v197
      %420 = vmatprep.subr.bf16.mxu0 0
      %421 = vmatpush1.bf16.msra.mxu0 %v198
      %422 = vmatprep.subr.bf16.mxu0 0
      %423 = vmatpush1.bf16.msra.mxu0 %v199
      %424 = vmatprep.subr.bf16.mxu0 0
      %425 = vmatpush1.bf16.msra.mxu0 %v200
      %426 = vmatprep.subr.bf16.mxu0 0
      %427 = vmatpush1.bf16.msra.mxu0 0
      %428 = vmatprep.subr.bf16.mxu0 0
      %429 = vmatpush1.bf16.msra.mxu0 0
      %430 = vmatprep.subr.bf16.mxu0 0
      %431 = vmatpush1.bf16.msra.mxu0 0
      %432 = vmatprep.subr.bf16.mxu0 0
      %433 = vmatpush1.bf16.msra.mxu0 0
      %434 = vmatprep.subr.bf16.mxu0 0
      %435 = vmatpush1.bf16.msra.mxu0 0
      %436 = vmatprep.subr.bf16.mxu0 0
      %437 = vmatpush1.bf16.msra.mxu0 0
      %438 = vmatprep.subr.bf16.mxu0 0
      %439 = vmatpush1.bf16.msra.mxu0 0
      %440 = vmatprep.subr.bf16.mxu0 0
      %441 = vmatpush1.bf16.msra.mxu0 0
      %442 = vmatprep.subr.bf16.mxu0 0
      %443 = vmatpush1.bf16.msra.mxu0 0
      %444 = vmatprep.subr.bf16.mxu0 0
      %445 = vmatpush1.bf16.msra.mxu0 0
      %446 = vmatprep.subr.bf16.mxu0 0
      %447 = vmatpush1.bf16.msra.mxu0 0
      %448 = vmatprep.subr.bf16.mxu0 0
      %449 = vmatpush1.bf16.msra.mxu0 0
      %450 = vmatprep.mubr.bf16.mxu0 0
      %451 = vmatmul.mubr.bf16.gmra.mrb[0].mxu0 %v416
      %v452 = vpop.f32.mrb[0].mxu0
      %v453 = vadd.f32 %v297, %v452
      %v454 = vpop.f32.mrb[0].mxu0
      %v455 = vpop.f32.mrb[0].mxu0
      %v456 = vpop.f32.mrb[0].mxu0
      %457 = vdwg.mxu0
      %v458 = vmul.f32 %v410, %v453
      %v459 = vadd.f32 %v359, %v458
      %v460 = vtanh.pop %v459
      %v461 = vpack.c.bf16 %v460, %v460
      %v463 = vsel %vm366, %v461, 0
      %465 = vmatprep.subr.bf16.mxu0 0
      %466 = vmatpush1.bf16.msra.mxu0 %v197
      %467 = vmatprep.subr.bf16.mxu0 0
      %468 = vmatpush1.bf16.msra.mxu0 %v198
      %469 = vmatprep.subr.bf16.mxu0 0
      %470 = vmatpush1.bf16.msra.mxu0 %v199
      %471 = vmatprep.subr.bf16.mxu0 0
      %472 = vmatpush1.bf16.msra.mxu0 %v200
      %473 = vmatprep.subr.bf16.mxu0 0
      %474 = vmatpush1.bf16.msra.mxu0 0
      %475 = vmatprep.subr.bf16.mxu0 0
      %476 = vmatpush1.bf16.msra.mxu0 0
      %477 = vmatprep.subr.bf16.mxu0 0
      %478 = vmatpush1.bf16.msra.mxu0 0
      %479 = vmatprep.subr.bf16.mxu0 0
      %480 = vmatpush1.bf16.msra.mxu0 0
      %481 = vmatprep.subr.bf16.mxu0 0
      %482 = vmatpush1.bf16.msra.mxu0 0
      %483 = vmatprep.subr.bf16.mxu0 0
      %484 = vmatpush1.bf16.msra.mxu0 0
      %485 = vmatprep.subr.bf16.mxu0 0
      %486 = vmatpush1.bf16.msra.mxu0 0
      %487 = vmatprep.subr.bf16.mxu0 0
      %488 = vmatpush1.bf16.msra.mxu0 0
      %489 = vmatprep.subr.bf16.mxu0 0
      %490 = vmatpush1.bf16.msra.mxu0 0
      %491 = vmatprep.subr.bf16.mxu0 0
      %492 = vmatpush1.bf16.msra.mxu0 0
      %493 = vmatprep.subr.bf16.mxu0 0
      %494 = vmatpush1.bf16.msra.mxu0 0
      %495 = vmatprep.subr.bf16.mxu0 0
      %496 = vmatpush1.bf16.msra.mxu0 0
      %497 = vmatprep.mubr.bf16.mxu0 0
      %498 = vmatmul.mubr.bf16.gmra.mrb[0].mxu0 %v463
      %v499 = vpop.f32.mrb[0].mxu0
      %v500 = vadd.f32 %v297, %v499
      %v501 = vpop.f32.mrb[0].mxu0
      %v502 = vpop.f32.mrb[0].mxu0
      %v503 = vpop.f32.mrb[0].mxu0
      %504 = vdwg.mxu0
      %v505 = vmul.f32 %v318, %v500
      %v506 = vadd.f32 %v359, %v505
      %v507 = vtanh.pop %v506
      %v508 = vadd.f32 %v413, %v460
      %v509 = vmul.f32 %v508, 2.0
      %v510 = vadd.f32 %v364, %v509
      %v511 = vadd.f32 %v510, %v507
      %v512 = vpack.c.bf16 %v511, %v511
      %v514 = vsel %vm366, %v512, 0
      %516 = vmatprep.subr.bf16.mxu0 0
      %517 = vmatpush1.bf16.msra.mxu0 %v57
      %518 = vmatprep.subr.bf16.mxu0 0
      %519 = vmatpush1.bf16.msra.mxu0 %v58
      %520 = vmatprep.subr.bf16.mxu0 0
      %521 = vmatpush1.bf16.msra.mxu0 %v59
      %522 = vmatprep.subr.bf16.mxu0 0
      %523 = vmatpush1.bf16.msra.mxu0 %v60
      %524 = vmatprep.subr.bf16.mxu0 0
      %525 = vmatpush1.bf16.msra.mxu0 0
      %526 = vmatprep.subr.bf16.mxu0 0
      %527 = vmatpush1.bf16.msra.mxu0 0
      %528 = vmatprep.subr.bf16.mxu0 0
      %529 = vmatpush1.bf16.msra.mxu0 0
      %530 = vmatprep.subr.bf16.mxu0 0
      %531 = vmatpush1.bf16.msra.mxu0 0
      %532 = vmatprep.subr.bf16.mxu0 0
      %533 = vmatpush1.bf16.msra.mxu0 0
      %534 = vmatprep.subr.bf16.mxu0 0
      %535 = vmatpush1.bf16.msra.mxu0 0
      %536 = vmatprep.subr.bf16.mxu0 0
      %537 = vmatpush1.bf16.msra.mxu0 0
      %538 = vmatprep.subr.bf16.mxu0 0
      %539 = vmatpush1.bf16.msra.mxu0 0
      %540 = vmatprep.subr.bf16.mxu0 0
      %541 = vmatpush1.bf16.msra.mxu0 0
      %542 = vmatprep.subr.bf16.mxu0 0
      %543 = vmatpush1.bf16.msra.mxu0 0
      %544 = vmatprep.subr.bf16.mxu0 0
      %545 = vmatpush1.bf16.msra.mxu0 0
      %546 = vmatprep.subr.bf16.mxu0 0
      %547 = vmatpush1.bf16.msra.mxu0 0
      %548 = vmatprep.mubr.bf16.mxu0 0
      %549 = vmatmul.mubr.bf16.gmra.mrb[0].mxu0 %v514
      %v550 = vpop.f32.mrb[0].mxu0
      %v551 = vadd.f32 0.0, %v550
      %v552 = vpop.f32.mrb[0].mxu0
      %v553 = vpop.f32.mrb[0].mxu0
      %v554 = vpop.f32.mrb[0].mxu0
      %555 = vdwg.mxu0
      %v556 = vstv %s317
      %v557 = vmul.f32 %v556, %v551
      %v558 = vadd.f32 %v306, %v557
      %v559 = vadd.f32 %v558, %v319
      %v560 = vpack.c.bf16 %v559, %v559
      %v562 = vsel %vm67, %v560, 0
      %564 = vmatprep.subr.bf16.mxu0 0
      %565 = vmatpush1.bf16.msra.mxu0 %v55
      %566 = vmatprep.subr.bf16.mxu0 0
      %567 = vmatpush1.bf16.msra.mxu0 %v56
      %568 = vmatprep.subr.bf16.mxu0 0
      %569 = vmatpush1.bf16.msra.mxu0 0
      %570 = vmatprep.subr.bf16.mxu0 0
      %571 = vmatpush1.bf16.msra.mxu0 0
      %572 = vmatprep.subr.bf16.mxu0 0
      %573 = vmatpush1.bf16.msra.mxu0 0
      %574 = vmatprep.subr.bf16.mxu0 0
      %575 = vmatpush1.bf16.msra.mxu0 0
      %576 = vmatprep.subr.bf16.mxu0 0
      %577 = vmatpush1.bf16.msra.mxu0 0
      %578 = vmatprep.subr.bf16.mxu0 0
      %579 = vmatpush1.bf16.msra.mxu0 0
      %580 = vmatprep.subr.bf16.mxu0 0
      %581 = vmatpush1.bf16.msra.mxu0 0
      %582 = vmatprep.subr.bf16.mxu0 0
      %583 = vmatpush1.bf16.msra.mxu0 0
      %584 = vmatprep.subr.bf16.mxu0 0
      %585 = vmatpush1.bf16.msra.mxu0 0
      %586 = vmatprep.subr.bf16.mxu0 0
      %587 = vmatpush1.bf16.msra.mxu0 0
      %588 = vmatprep.subr.bf16.mxu0 0
      %589 = vmatpush1.bf16.msra.mxu0 0
      %590 = vmatprep.subr.bf16.mxu0 0
      %591 = vmatpush1.bf16.msra.mxu0 0
      %592 = vmatprep.subr.bf16.mxu0 0
      %593 = vmatpush1.bf16.msra.mxu0 0
      %594 = vmatprep.subr.bf16.mxu0 0
      %595 = vmatpush1.bf16.msra.mxu0 0
      %596 = vmatprep.mubr.bf16.mxu0 0
      %597 = vmatmul.mubr.bf16.gmra.mrb[0].mxu0 %v562
      %v598 = vpop.f32.mrb[0].mxu0
      %v599 = vadd.f32 %v206, %v598
      %v600 = vpop.f32.mrb[0].mxu0
      %v601 = vpop.f32.mrb[0].mxu0
      %v602 = vpop.f32.mrb[0].mxu0
      %603 = vdwg.mxu0
      %v604 = vtanh.pop %v599
      %v605 = vpack.c.bf16 %v604, %v604
      %v607 = vsel %vm366, %v605, 0
      %609 = vmatprep.subr.bf16.mxu0 0
      %610 = vmatpush1.bf16.msra.mxu0 %v197
      %611 = vmatprep.subr.bf16.mxu0 0
      %612 = vmatpush1.bf16.msra.mxu0 %v198
      %613 = vmatprep.subr.bf16.mxu0 0
      %614 = vmatpush1.bf16.msra.mxu0 %v199
      %615 = vmatprep.subr.bf16.mxu0 0
      %616 = vmatpush1.bf16.msra.mxu0 %v200
      %617 = vmatprep.subr.bf16.mxu0 0
      %618 = vmatpush1.bf16.msra.mxu0 0
      %619 = vmatprep.subr.bf16.mxu0 0
      %620 = vmatpush1.bf16.msra.mxu0 0
      %621 = vmatprep.subr.bf16.mxu0 0
      %622 = vmatpush1.bf16.msra.mxu0 0
      %623 = vmatprep.subr.bf16.mxu0 0
      %624 = vmatpush1.bf16.msra.mxu0 0
      %625 = vmatprep.subr.bf16.mxu0 0
      %626 = vmatpush1.bf16.msra.mxu0 0
      %627 = vmatprep.subr.bf16.mxu0 0
      %628 = vmatpush1.bf16.msra.mxu0 0
      %629 = vmatprep.subr.bf16.mxu0 0
      %630 = vmatpush1.bf16.msra.mxu0 0
      %631 = vmatprep.subr.bf16.mxu0 0
      %632 = vmatpush1.bf16.msra.mxu0 0
      %633 = vmatprep.subr.bf16.mxu0 0
      %634 = vmatpush1.bf16.msra.mxu0 0
      %635 = vmatprep.subr.bf16.mxu0 0
      %636 = vmatpush1.bf16.msra.mxu0 0
      %637 = vmatprep.subr.bf16.mxu0 0
      %638 = vmatpush1.bf16.msra.mxu0 0
      %639 = vmatprep.subr.bf16.mxu0 0
      %640 = vmatpush1.bf16.msra.mxu0 0
      %641 = vmatprep.mubr.bf16.mxu0 0
      %642 = vmatmul.mubr.bf16.gmra.mrb[0].mxu0 %v607
      %v643 = vpop.f32.mrb[0].mxu0
      %v644 = vadd.f32 %v297, %v643
      %v645 = vpop.f32.mrb[0].mxu0
      %v646 = vpop.f32.mrb[0].mxu0
      %v647 = vpop.f32.mrb[0].mxu0
      %648 = vdwg.mxu0
      %v649 = vmul.f32 %v410, %v644
      %v650 = vadd.f32 %v599, %v649
      %v651 = vtanh.pop %v650
      %v652 = vpack.c.bf16 %v651, %v651
      %v654 = vsel %vm366, %v652, 0
      %656 = vmatprep.subr.bf16.mxu0 0
      %657 = vmatpush1.bf16.msra.mxu0 %v197
      %658 = vmatprep.subr.bf16.mxu0 0
      %659 = vmatpush1.bf16.msra.mxu0 %v198
      %660 = vmatprep.subr.bf16.mxu0 0
      %661 = vmatpush1.bf16.msra.mxu0 %v199
      %662 = vmatprep.subr.bf16.mxu0 0
      %663 = vmatpush1.bf16.msra.mxu0 %v200
      %664 = vmatprep.subr.bf16.mxu0 0
      %665 = vmatpush1.bf16.msra.mxu0 0
      %666 = vmatprep.subr.bf16.mxu0 0
      %667 = vmatpush1.bf16.msra.mxu0 0
      %668 = vmatprep.subr.bf16.mxu0 0
      %669 = vmatpush1.bf16.msra.mxu0 0
      %670 = vmatprep.subr.bf16.mxu0 0
      %671 = vmatpush1.bf16.msra.mxu0 0
      %672 = vmatprep.subr.bf16.mxu0 0
      %673 = vmatpush1.bf16.msra.mxu0 0
      %674 = vmatprep.subr.bf16.mxu0 0
      %675 = vmatpush1.bf16.msra.mxu0 0
      %676 = vmatprep.subr.bf16.mxu0 0
      %677 = vmatpush1.bf16.msra.mxu0 0
      %678 = vmatprep.subr.bf16.mxu0 0
      %679 = vmatpush1.bf16.msra.mxu0 0
      %680 = vmatprep.subr.bf16.mxu0 0
      %681 = vmatpush1.bf16.msra.mxu0 0
      %682 = vmatprep.subr.bf16.mxu0 0
      %683 = vmatpush1.bf16.msra.mxu0 0
      %684 = vmatprep.subr.bf16.mxu0 0
      %685 = vmatpush1.bf16.msra.mxu0 0
      %686 = vmatprep.subr.bf16.mxu0 0
      %687 = vmatpush1.bf16.msra.mxu0 0
      %688 = vmatprep.mubr.bf16.mxu0 0
      %689 = vmatmul.mubr.bf16.gmra.mrb[0].mxu0 %v654
      %v690 = vpop.f32.mrb[0].mxu0
      %v691 = vadd.f32 %v297, %v690
      %v692 = vpop.f32.mrb[0].mxu0
      %v693 = vpop.f32.mrb[0].mxu0
      %v694 = vpop.f32.mrb[0].mxu0
      %695 = vdwg.mxu0
      %v696 = vmul.f32 %v410, %v691
      %v697 = vadd.f32 %v599, %v696
      %v698 = vtanh.pop %v697
      %v699 = vpack.c.bf16 %v698, %v698
      %v701 = vsel %vm366, %v699, 0
      %703 = vmatprep.subr.bf16.mxu0 0
      %704 = vmatpush1.bf16.msra.mxu0 %v197
      %705 = vmatprep.subr.bf16.mxu0 0
      %706 = vmatpush1.bf16.msra.mxu0 %v198
      %707 = vmatprep.subr.bf16.mxu0 0
      %708 = vmatpush1.bf16.msra.mxu0 %v199
      %709 = vmatprep.subr.bf16.mxu0 0
      %710 = vmatpush1.bf16.msra.mxu0 %v200
      %711 = vmatprep.subr.bf16.mxu0 0
      %712 = vmatpush1.bf16.msra.mxu0 0
      %713 = vmatprep.subr.bf16.mxu0 0
      %714 = vmatpush1.bf16.msra.mxu0 0
      %715 = vmatprep.subr.bf16.mxu0 0
      %716 = vmatpush1.bf16.msra.mxu0 0
      %717 = vmatprep.subr.bf16.mxu0 0
      %718 = vmatpush1.bf16.msra.mxu0 0
      %719 = vmatprep.subr.bf16.mxu0 0
      %720 = vmatpush1.bf16.msra.mxu0 0
      %721 = vmatprep.subr.bf16.mxu0 0
      %722 = vmatpush1.bf16.msra.mxu0 0
      %723 = vmatprep.subr.bf16.mxu0 0
      %724 = vmatpush1.bf16.msra.mxu0 0
      %725 = vmatprep.subr.bf16.mxu0 0
      %726 = vmatpush1.bf16.msra.mxu0 0
      %727 = vmatprep.subr.bf16.mxu0 0
      %728 = vmatpush1.bf16.msra.mxu0 0
      %729 = vmatprep.subr.bf16.mxu0 0
      %730 = vmatpush1.bf16.msra.mxu0 0
      %731 = vmatprep.subr.bf16.mxu0 0
      %732 = vmatpush1.bf16.msra.mxu0 0
      %733 = vmatprep.subr.bf16.mxu0 0
      %734 = vmatpush1.bf16.msra.mxu0 0
      %735 = vmatprep.mubr.bf16.mxu0 0
      %736 = vmatmul.mubr.bf16.gmra.mrb[0].mxu0 %v701
      %v737 = vpop.f32.mrb[0].mxu0
      %v738 = vadd.f32 %v297, %v737
      %v739 = vpop.f32.mrb[0].mxu0
      %v740 = vpop.f32.mrb[0].mxu0
      %v741 = vpop.f32.mrb[0].mxu0
      %742 = vdwg.mxu0
      %v743 = vmul.f32 %v318, %v738
      %v744 = vadd.f32 %v599, %v743
      %v745 = vtanh.pop %v744
      %v746 = vadd.f32 %v651, %v698
      %v747 = vmul.f32 %v746, 2.0
      %v748 = vadd.f32 %v604, %v747
      %v749 = vadd.f32 %v748, %v745
      %v750 = vpack.c.bf16 %v749, %v749
      %v752 = vsel %vm366, %v750, 0
      %754 = vmatprep.subr.bf16.mxu0 0
      %755 = vmatpush1.bf16.msra.mxu0 %v57
      %756 = vmatprep.subr.bf16.mxu0 0
      %757 = vmatpush1.bf16.msra.mxu0 %v58
      %758 = vmatprep.subr.bf16.mxu0 0
      %759 = vmatpush1.bf16.msra.mxu0 %v59
      %760 = vmatprep.subr.bf16.mxu0 0
      %761 = vmatpush1.bf16.msra.mxu0 %v60
      %762 = vmatprep.subr.bf16.mxu0 0
      %763 = vmatpush1.bf16.msra.mxu0 0
      %764 = vmatprep.subr.bf16.mxu0 0
      %765 = vmatpush1.bf16.msra.mxu0 0
      %766 = vmatprep.subr.bf16.mxu0 0
      %767 = vmatpush1.bf16.msra.mxu0 0
      %768 = vmatprep.subr.bf16.mxu0 0
      %769 = vmatpush1.bf16.msra.mxu0 0
      %770 = vmatprep.subr.bf16.mxu0 0
      %771 = vmatpush1.bf16.msra.mxu0 0
      %772 = vmatprep.subr.bf16.mxu0 0
      %773 = vmatpush1.bf16.msra.mxu0 0
      %774 = vmatprep.subr.bf16.mxu0 0
      %775 = vmatpush1.bf16.msra.mxu0 0
      %776 = vmatprep.subr.bf16.mxu0 0
      %777 = vmatpush1.bf16.msra.mxu0 0
      %778 = vmatprep.subr.bf16.mxu0 0
      %779 = vmatpush1.bf16.msra.mxu0 0
      %780 = vmatprep.subr.bf16.mxu0 0
      %781 = vmatpush1.bf16.msra.mxu0 0
      %782 = vmatprep.subr.bf16.mxu0 0
      %783 = vmatpush1.bf16.msra.mxu0 0
      %784 = vmatprep.subr.bf16.mxu0 0
      %785 = vmatpush1.bf16.msra.mxu0 0
      %786 = vmatprep.mubr.bf16.mxu0 0
      %787 = vmatmul.mubr.bf16.gmra.mrb[0].mxu0 %v752
      %v788 = vpop.f32.mrb[0].mxu0
      %v789 = vadd.f32 0.0, %v788
      %v790 = vpop.f32.mrb[0].mxu0
      %v791 = vpop.f32.mrb[0].mxu0
      %v792 = vpop.f32.mrb[0].mxu0
      %793 = vdwg.mxu0
      %v794 = vmul.f32 %v556, %v789
      %v795 = vadd.f32 %v559, %v794
      %v796 = vadd.f32 %v795, %v319
      %v797 = vpack.c.bf16 %v796, %v796
      %v799 = vsel %vm67, %v797, 0
      %801 = vmatprep.subr.bf16.mxu0 0
      %802 = vmatpush1.bf16.msra.mxu0 %v55
      %803 = vmatprep.subr.bf16.mxu0 0
      %804 = vmatpush1.bf16.msra.mxu0 %v56
      %805 = vmatprep.subr.bf16.mxu0 0
      %806 = vmatpush1.bf16.msra.mxu0 0
      %807 = vmatprep.subr.bf16.mxu0 0
      %808 = vmatpush1.bf16.msra.mxu0 0
      %809 = vmatprep.subr.bf16.mxu0 0
      %810 = vmatpush1.bf16.msra.mxu0 0
      %811 = vmatprep.subr.bf16.mxu0 0
      %812 = vmatpush1.bf16.msra.mxu0 0
      %813 = vmatprep.subr.bf16.mxu0 0
      %814 = vmatpush1.bf16.msra.mxu0 0
      %815 = vmatprep.subr.bf16.mxu0 0
      %816 = vmatpush1.bf16.msra.mxu0 0
      %817 = vmatprep.subr.bf16.mxu0 0
      %818 = vmatpush1.bf16.msra.mxu0 0
      %819 = vmatprep.subr.bf16.mxu0 0
      %820 = vmatpush1.bf16.msra.mxu0 0
      %821 = vmatprep.subr.bf16.mxu0 0
      %822 = vmatpush1.bf16.msra.mxu0 0
      %823 = vmatprep.subr.bf16.mxu0 0
      %824 = vmatpush1.bf16.msra.mxu0 0
      %825 = vmatprep.subr.bf16.mxu0 0
      %826 = vmatpush1.bf16.msra.mxu0 0
      %827 = vmatprep.subr.bf16.mxu0 0
      %828 = vmatpush1.bf16.msra.mxu0 0
      %829 = vmatprep.subr.bf16.mxu0 0
      %830 = vmatpush1.bf16.msra.mxu0 0
      %831 = vmatprep.subr.bf16.mxu0 0
      %832 = vmatpush1.bf16.msra.mxu0 0
      %833 = vmatprep.mubr.bf16.mxu0 0
      %834 = vmatmul.mubr.bf16.gmra.mrb[0].mxu0 %v799
      %v835 = vpop.f32.mrb[0].mxu0
      %v836 = vadd.f32 %v206, %v835
      %v837 = vpop.f32.mrb[0].mxu0
      %v838 = vpop.f32.mrb[0].mxu0
      %v839 = vpop.f32.mrb[0].mxu0
      %840 = vdwg.mxu0
      %v841 = vtanh.pop %v836
      %v842 = vpack.c.bf16 %v841, %v841
      %v844 = vsel %vm366, %v842, 0
      %846 = vmatprep.subr.bf16.mxu0 0
      %847 = vmatpush1.bf16.msra.mxu0 %v197
      %848 = vmatprep.subr.bf16.mxu0 0
      %849 = vmatpush1.bf16.msra.mxu0 %v198
      %850 = vmatprep.subr.bf16.mxu0 0
      %851 = vmatpush1.bf16.msra.mxu0 %v199
      %852 = vmatprep.subr.bf16.mxu0 0
      %853 = vmatpush1.bf16.msra.mxu0 %v200
      %854 = vmatprep.subr.bf16.mxu0 0
      %855 = vmatpush1.bf16.msra.mxu0 0
      %856 = vmatprep.subr.bf16.mxu0 0
      %857 = vmatpush1.bf16.msra.mxu0 0
      %858 = vmatprep.subr.bf16.mxu0 0
      %859 = vmatpush1.bf16.msra.mxu0 0
      %860 = vmatprep.subr.bf16.mxu0 0
      %861 = vmatpush1.bf16.msra.mxu0 0
      %862 = vmatprep.subr.bf16.mxu0 0
      %863 = vmatpush1.bf16.msra.mxu0 0
      %864 = vmatprep.subr.bf16.mxu0 0
      %865 = vmatpush1.bf16.msra.mxu0 0
      %866 = vmatprep.subr.bf16.mxu0 0
      %867 = vmatpush1.bf16.msra.mxu0 0
      %868 = vmatprep.subr.bf16.mxu0 0
      %869 = vmatpush1.bf16.msra.mxu0 0
      %870 = vmatprep.subr.bf16.mxu0 0
      %871 = vmatpush1.bf16.msra.mxu0 0
      %872 = vmatprep.subr.bf16.mxu0 0
      %873 = vmatpush1.bf16.msra.mxu0 0
      %874 = vmatprep.subr.bf16.mxu0 0
      %875 = vmatpush1.bf16.msra.mxu0 0
      %876 = vmatprep.subr.bf16.mxu0 0
      %877 = vmatpush1.bf16.msra.mxu0 0
      %878 = vmatprep.mubr.bf16.mxu0 0
      %879 = vmatmul.mubr.bf16.gmra.mrb[0].mxu0 %v844
      %v880 = vpop.f32.mrb[0].mxu0
      %v881 = vadd.f32 %v297, %v880
      %v882 = vpop.f32.mrb[0].mxu0
      %v883 = vpop.f32.mrb[0].mxu0
      %v884 = vpop.f32.mrb[0].mxu0
      %885 = vdwg.mxu0
      %v886 = vmul.f32 %v410, %v881
      %v887 = vadd.f32 %v836, %v886
      %v888 = vtanh.pop %v887
      %v889 = vpack.c.bf16 %v888, %v888
      %v891 = vsel %vm366, %v889, 0
      %893 = vmatprep.subr.bf16.mxu0 0
      %894 = vmatpush1.bf16.msra.mxu0 %v197
      %895 = vmatprep.subr.bf16.mxu0 0
      %896 = vmatpush1.bf16.msra.mxu0 %v198
      %897 = vmatprep.subr.bf16.mxu0 0
      %898 = vmatpush1.bf16.msra.mxu0 %v199
      %899 = vmatprep.subr.bf16.mxu0 0
      %900 = vmatpush1.bf16.msra.mxu0 %v200
      %901 = vmatprep.subr.bf16.mxu0 0
      %902 = vmatpush1.bf16.msra.mxu0 0
      %903 = vmatprep.subr.bf16.mxu0 0
      %904 = vmatpush1.bf16.msra.mxu0 0
      %905 = vmatprep.subr.bf16.mxu0 0
      %906 = vmatpush1.bf16.msra.mxu0 0
      %907 = vmatprep.subr.bf16.mxu0 0
      %908 = vmatpush1.bf16.msra.mxu0 0
      %909 = vmatprep.subr.bf16.mxu0 0
      %910 = vmatpush1.bf16.msra.mxu0 0
      %911 = vmatprep.subr.bf16.mxu0 0
      %912 = vmatpush1.bf16.msra.mxu0 0
      %913 = vmatprep.subr.bf16.mxu0 0
      %914 = vmatpush1.bf16.msra.mxu0 0
      %915 = vmatprep.subr.bf16.mxu0 0
      %916 = vmatpush1.bf16.msra.mxu0 0
      %917 = vmatprep.subr.bf16.mxu0 0
      %918 = vmatpush1.bf16.msra.mxu0 0
      %919 = vmatprep.subr.bf16.mxu0 0
      %920 = vmatpush1.bf16.msra.mxu0 0
      %921 = vmatprep.subr.bf16.mxu0 0
      %922 = vmatpush1.bf16.msra.mxu0 0
      %923 = vmatprep.subr.bf16.mxu0 0
      %924 = vmatpush1.bf16.msra.mxu0 0
      %925 = vmatprep.mubr.bf16.mxu0 0
      %926 = vmatmul.mubr.bf16.gmra.mrb[0].mxu0 %v891
      %v927 = vpop.f32.mrb[0].mxu0
      %v928 = vadd.f32 %v297, %v927
      %v929 = vpop.f32.mrb[0].mxu0
      %v930 = vpop.f32.mrb[0].mxu0
      %v931 = vpop.f32.mrb[0].mxu0
      %932 = vdwg.mxu0
      %v933 = vmul.f32 %v410, %v928
      %v934 = vadd.f32 %v836, %v933
      %v935 = vtanh.pop %v934
      %v936 = vpack.c.bf16 %v935, %v935
      %v938 = vsel %vm366, %v936, 0
      %940 = vmatprep.subr.bf16.mxu0 0
      %941 = vmatpush1.bf16.msra.mxu0 %v197
      %942 = vmatprep.subr.bf16.mxu0 0
      %943 = vmatpush1.bf16.msra.mxu0 %v198
      %944 = vmatprep.subr.bf16.mxu0 0
      %945 = vmatpush1.bf16.msra.mxu0 %v199
      %946 = vmatprep.subr.bf16.mxu0 0
      %947 = vmatpush1.bf16.msra.mxu0 %v200
      %948 = vmatprep.subr.bf16.mxu0 0
      %949 = vmatpush1.bf16.msra.mxu0 0
      %950 = vmatprep.subr.bf16.mxu0 0
      %951 = vmatpush1.bf16.msra.mxu0 0
      %952 = vmatprep.subr.bf16.mxu0 0
      %953 = vmatpush1.bf16.msra.mxu0 0
      %954 = vmatprep.subr.bf16.mxu0 0
      %955 = vmatpush1.bf16.msra.mxu0 0
      %956 = vmatprep.subr.bf16.mxu0 0
      %957 = vmatpush1.bf16.msra.mxu0 0
      %958 = vmatprep.subr.bf16.mxu0 0
      %959 = vmatpush1.bf16.msra.mxu0 0
      %960 = vmatprep.subr.bf16.mxu0 0
      %961 = vmatpush1.bf16.msra.mxu0 0
      %962 = vmatprep.subr.bf16.mxu0 0
      %963 = vmatpush1.bf16.msra.mxu0 0
      %964 = vmatprep.subr.bf16.mxu0 0
      %965 = vmatpush1.bf16.msra.mxu0 0
      %966 = vmatprep.subr.bf16.mxu0 0
      %967 = vmatpush1.bf16.msra.mxu0 0
      %968 = vmatprep.subr.bf16.mxu0 0
      %969 = vmatpush1.bf16.msra.mxu0 0
      %970 = vmatprep.subr.bf16.mxu0 0
      %971 = vmatpush1.bf16.msra.mxu0 0
      %972 = vmatprep.mubr.bf16.mxu0 0
      %973 = vmatmul.mubr.bf16.gmra.mrb[0].mxu0 %v938
      %v974 = vpop.f32.mrb[0].mxu0
      %v975 = vadd.f32 %v297, %v974
      %v976 = vpop.f32.mrb[0].mxu0
      %v977 = vpop.f32.mrb[0].mxu0
      %v978 = vpop.f32.mrb[0].mxu0
      %979 = vdwg.mxu0
      %v980 = vmul.f32 %v318, %v975
      %v981 = vadd.f32 %v836, %v980
      %v982 = vtanh.pop %v981
      %v983 = vadd.f32 %v888, %v935
      %v984 = vmul.f32 %v983, 2.0
      %v985 = vadd.f32 %v841, %v984
      %v986 = vadd.f32 %v985, %v982
      %v987 = vpack.c.bf16 %v986, %v986
      %v989 = vsel %vm366, %v987, 0
      %991 = vmatprep.subr.bf16.mxu0 0
      %992 = vmatpush1.bf16.msra.mxu0 %v57
      %993 = vmatprep.subr.bf16.mxu0 0
      %994 = vmatpush1.bf16.msra.mxu0 %v58
      %995 = vmatprep.subr.bf16.mxu0 0
      %996 = vmatpush1.bf16.msra.mxu0 %v59
      %997 = vmatprep.subr.bf16.mxu0 0
      %998 = vmatpush1.bf16.msra.mxu0 %v60
      %999 = vmatprep.subr.bf16.mxu0 0
      %1000 = vmatpush1.bf16.msra.mxu0 0
      %1001 = vmatprep.subr.bf16.mxu0 0
      %1002 = vmatpush1.bf16.msra.mxu0 0
      %1003 = vmatprep.subr.bf16.mxu0 0
      %1004 = vmatpush1.bf16.msra.mxu0 0
      %1005 = vmatprep.subr.bf16.mxu0 0
      %1006 = vmatpush1.bf16.msra.mxu0 0
      %1007 = vmatprep.subr.bf16.mxu0 0
      %1008 = vmatpush1.bf16.msra.mxu0 0
      %1009 = vmatprep.subr.bf16.mxu0 0
      %1010 = vmatpush1.bf16.msra.mxu0 0
      %1011 = vmatprep.subr.bf16.mxu0 0
      %1012 = vmatpush1.bf16.msra.mxu0 0
      %1013 = vmatprep.subr.bf16.mxu0 0
      %1014 = vmatpush1.bf16.msra.mxu0 0
      %1015 = vmatprep.subr.bf16.mxu0 0
      %1016 = vmatpush1.bf16.msra.mxu0 0
      %1017 = vmatprep.subr.bf16.mxu0 0
      %1018 = vmatpush1.bf16.msra.mxu0 0
      %1019 = vmatprep.subr.bf16.mxu0 0
      %1020 = vmatpush1.bf16.msra.mxu0 0
      %1021 = vmatprep.subr.bf16.mxu0 0
      %1022 = vmatpush1.bf16.msra.mxu0 0
      %1023 = vmatprep.mubr.bf16.mxu0 0
      %1024 = vmatmul.mubr.bf16.gmra.mrb[0].mxu0 %v989
      %v1025 = vpop.f32.mrb[0].mxu0
      %v1026 = vadd.f32 0.0, %v1025
      %v1027 = vpop.f32.mrb[0].mxu0
      %v1028 = vpop.f32.mrb[0].mxu0
      %v1029 = vpop.f32.mrb[0].mxu0
      %1030 = vdwg.mxu0
      %v1031 = vmul.f32 %v556, %v1026
      %v1032 = vadd.f32 %v796, %v1031
      %v1033 = vadd.f32 %v1032, %v319
      %v1034 = vpack.c.bf16 %v1033, %v1033
      %v1036 = vsel %vm67, %v1034, 0
      %1038 = vmatprep.subr.bf16.mxu0 0
      %1039 = vmatpush1.bf16.msra.mxu0 %v55
      %1040 = vmatprep.subr.bf16.mxu0 0
      %1041 = vmatpush1.bf16.msra.mxu0 %v56
      %1042 = vmatprep.subr.bf16.mxu0 0
      %1043 = vmatpush1.bf16.msra.mxu0 0
      %1044 = vmatprep.subr.bf16.mxu0 0
      %1045 = vmatpush1.bf16.msra.mxu0 0
      %1046 = vmatprep.subr.bf16.mxu0 0
      %1047 = vmatpush1.bf16.msra.mxu0 0
      %1048 = vmatprep.subr.bf16.mxu0 0
      %1049 = vmatpush1.bf16.msra.mxu0 0
      %1050 = vmatprep.subr.bf16.mxu0 0
      %1051 = vmatpush1.bf16.msra.mxu0 0
      %1052 = vmatprep.subr.bf16.mxu0 0
      %1053 = vmatpush1.bf16.msra.mxu0 0
      %1054 = vmatprep.subr.bf16.mxu0 0
      %1055 = vmatpush1.bf16.msra.mxu0 0
      %1056 = vmatprep.subr.bf16.mxu0 0
      %1057 = vmatpush1.bf16.msra.mxu0 0
      %1058 = vmatprep.subr.bf16.mxu0 0
      %1059 = vmatpush1.bf16.msra.mxu0 0
      %1060 = vmatprep.subr.bf16.mxu0 0
      %1061 = vmatpush1.bf16.msra.mxu0 0
      %1062 = vmatprep.subr.bf16.mxu0 0
      %1063 = vmatpush1.bf16.msra.mxu0 0
      %1064 = vmatprep.subr.bf16.mxu0 0
      %1065 = vmatpush1.bf16.msra.mxu0 0
      %1066 = vmatprep.subr.bf16.mxu0 0
      %1067 = vmatpush1.bf16.msra.mxu0 0
      %1068 = vmatprep.subr.bf16.mxu0 0
      %1069 = vmatpush1.bf16.msra.mxu0 0
      %1070 = vmatprep.mubr.bf16.mxu0 0
      %1071 = vmatmul.mubr.bf16.gmra.mrb[0].mxu0 %v1036
      %v1072 = vpop.f32.mrb[0].mxu0
      %v1073 = vadd.f32 %v206, %v1072
      %v1074 = vpop.f32.mrb[0].mxu0
      %v1075 = vpop.f32.mrb[0].mxu0
      %v1076 = vpop.f32.mrb[0].mxu0
      %1077 = vdwg.mxu0
      %v1078 = vtanh.pop %v1073
      %v1079 = vpack.c.bf16 %v1078, %v1078
      %v1081 = vsel %vm366, %v1079, 0
      %1083 = vmatprep.subr.bf16.mxu0 0
      %1084 = vmatpush1.bf16.msra.mxu0 %v197
      %1085 = vmatprep.subr.bf16.mxu0 0
      %1086 = vmatpush1.bf16.msra.mxu0 %v198
      %1087 = vmatprep.subr.bf16.mxu0 0
      %1088 = vmatpush1.bf16.msra.mxu0 %v199
      %1089 = vmatprep.subr.bf16.mxu0 0
      %1090 = vmatpush1.bf16.msra.mxu0 %v200
      %1091 = vmatprep.subr.bf16.mxu0 0
      %1092 = vmatpush1.bf16.msra.mxu0 0
      %1093 = vmatprep.subr.bf16.mxu0 0
      %1094 = vmatpush1.bf16.msra.mxu0 0
      %1095 = vmatprep.subr.bf16.mxu0 0
      %1096 = vmatpush1.bf16.msra.mxu0 0
      %1097 = vmatprep.subr.bf16.mxu0 0
      %1098 = vmatpush1.bf16.msra.mxu0 0
      %1099 = vmatprep.subr.bf16.mxu0 0
      %1100 = vmatpush1.bf16.msra.mxu0 0
      %1101 = vmatprep.subr.bf16.mxu0 0
      %1102 = vmatpush1.bf16.msra.mxu0 0
      %1103 = vmatprep.subr.bf16.mxu0 0
      %1104 = vmatpush1.bf16.msra.mxu0 0
      %1105 = vmatprep.subr.bf16.mxu0 0
      %1106 = vmatpush1.bf16.msra.mxu0 0
      %1107 = vmatprep.subr.bf16.mxu0 0
      %1108 = vmatpush1.bf16.msra.mxu0 0
      %1109 = vmatprep.subr.bf16.mxu0 0
      %1110 = vmatpush1.bf16.msra.mxu0 0
      %1111 = vmatprep.subr.bf16.mxu0 0
      %1112 = vmatpush1.bf16.msra.mxu0 0
      %1113 = vmatprep.subr.bf16.mxu0 0
      %1114 = vmatpush1.bf16.msra.mxu0 0
      %1115 = vmatprep.mubr.bf16.mxu0 0
      %1116 = vmatmul.mubr.bf16.gmra.mrb[0].mxu0 %v1081
      %v1117 = vpop.f32.mrb[0].mxu0
      %v1118 = vadd.f32 %v297, %v1117
      %v1119 = vpop.f32.mrb[0].mxu0
      %v1120 = vpop.f32.mrb[0].mxu0
      %v1121 = vpop.f32.mrb[0].mxu0
      %1122 = vdwg.mxu0
      %v1123 = vmul.f32 %v410, %v1118
      %v1124 = vadd.f32 %v1073, %v1123
      %v1125 = vtanh.pop %v1124
      %v1126 = vpack.c.bf16 %v1125, %v1125
      %v1128 = vsel %vm366, %v1126, 0
      %1130 = vmatprep.subr.bf16.mxu0 0
      %1131 = vmatpush1.bf16.msra.mxu0 %v197
      %1132 = vmatprep.subr.bf16.mxu0 0
      %1133 = vmatpush1.bf16.msra.mxu0 %v198
      %1134 = vmatprep.subr.bf16.mxu0 0
      %1135 = vmatpush1.bf16.msra.mxu0 %v199
      %1136 = vmatprep.subr.bf16.mxu0 0
      %1137 = vmatpush1.bf16.msra.mxu0 %v200
      %1138 = vmatprep.subr.bf16.mxu0 0
      %1139 = vmatpush1.bf16.msra.mxu0 0
      %1140 = vmatprep.subr.bf16.mxu0 0
      %1141 = vmatpush1.bf16.msra.mxu0 0
      %1142 = vmatprep.subr.bf16.mxu0 0
      %1143 = vmatpush1.bf16.msra.mxu0 0
      %1144 = vmatprep.subr.bf16.mxu0 0
      %1145 = vmatpush1.bf16.msra.mxu0 0
      %1146 = vmatprep.subr.bf16.mxu0 0
      %1147 = vmatpush1.bf16.msra.mxu0 0
      %1148 = vmatprep.subr.bf16.mxu0 0
      %1149 = vmatpush1.bf16.msra.mxu0 0
      %1150 = vmatprep.subr.bf16.mxu0 0
      %1151 = vmatpush1.bf16.msra.mxu0 0
      %1152 = vmatprep.subr.bf16.mxu0 0
      %1153 = vmatpush1.bf16.msra.mxu0 0
      %1154 = vmatprep.subr.bf16.mxu0 0
      %1155 = vmatpush1.bf16.msra.mxu0 0
      %1156 = vmatprep.subr.bf16.mxu0 0
      %1157 = vmatpush1.bf16.msra.mxu0 0
      %1158 = vmatprep.subr.bf16.mxu0 0
      %1159 = vmatpush1.bf16.msra.mxu0 0
      %1160 = vmatprep.subr.bf16.mxu0 0
      %1161 = vmatpush1.bf16.msra.mxu0 0
      %1162 = vmatprep.mubr.bf16.mxu0 0
      %1163 = vmatmul.mubr.bf16.gmra.mrb[0].mxu0 %v1128
      %v1164 = vpop.f32.mrb[0].mxu0
      %v1165 = vadd.f32 %v297, %v1164
      %v1166 = vpop.f32.mrb[0].mxu0
      %v1167 = vpop.f32.mrb[0].mxu0
      %v1168 = vpop.f32.mrb[0].mxu0
      %1169 = vdwg.mxu0
      %v1170 = vmul.f32 %v410, %v1165
      %v1171 = vadd.f32 %v1073, %v1170
      %v1172 = vtanh.pop %v1171
      %v1173 = vpack.c.bf16 %v1172, %v1172
      %v1175 = vsel %vm366, %v1173, 0
      %1177 = vmatprep.subr.bf16.mxu0 0
      %1178 = vmatpush1.bf16.msra.mxu0 %v197
      %1179 = vmatprep.subr.bf16.mxu0 0
      %1180 = vmatpush1.bf16.msra.mxu0 %v198
      %1181 = vmatprep.subr.bf16.mxu0 0
      %1182 = vmatpush1.bf16.msra.mxu0 %v199
      %1183 = vmatprep.subr.bf16.mxu0 0
      %1184 = vmatpush1.bf16.msra.mxu0 %v200
      %1185 = vmatprep.subr.bf16.mxu0 0
      %1186 = vmatpush1.bf16.msra.mxu0 0
      %1187 = vmatprep.subr.bf16.mxu0 0
      %1188 = vmatpush1.bf16.msra.mxu0 0
      %1189 = vmatprep.subr.bf16.mxu0 0
      %1190 = vmatpush1.bf16.msra.mxu0 0
      %1191 = vmatprep.subr.bf16.mxu0 0
      %1192 = vmatpush1.bf16.msra.mxu0 0
      %1193 = vmatprep.subr.bf16.mxu0 0
      %1194 = vmatpush1.bf16.msra.mxu0 0
      %1195 = vmatprep.subr.bf16.mxu0 0
      %1196 = vmatpush1.bf16.msra.mxu0 0
      %1197 = vmatprep.subr.bf16.mxu0 0
      %1198 = vmatpush1.bf16.msra.mxu0 0
      %1199 = vmatprep.subr.bf16.mxu0 0
      %1200 = vmatpush1.bf16.msra.mxu0 0
      %1201 = vmatprep.subr.bf16.mxu0 0
      %1202 = vmatpush1.bf16.msra.mxu0 0
      %1203 = vmatprep.subr.bf16.mxu0 0
      %1204 = vmatpush1.bf16.msra.mxu0 0
      %1205 = vmatprep.subr.bf16.mxu0 0
      %1206 = vmatpush1.bf16.msra.mxu0 0
      %1207 = vmatprep.subr.bf16.mxu0 0
      %1208 = vmatpush1.bf16.msra.mxu0 0
      %1209 = vmatprep.mubr.bf16.mxu0 0
      %1210 = vmatmul.mubr.bf16.gmra.mrb[0].mxu0 %v1175
      %v1211 = vpop.f32.mrb[0].mxu0
      %v1212 = vadd.f32 %v297, %v1211
      %v1213 = vpop.f32.mrb[0].mxu0
      %v1214 = vpop.f32.mrb[0].mxu0
      %v1215 = vpop.f32.mrb[0].mxu0
      %1216 = vdwg.mxu0
      %v1217 = vmul.f32 %v318, %v1212
      %v1218 = vadd.f32 %v1073, %v1217
      %v1219 = vtanh.pop %v1218
      %v1220 = vadd.f32 %v1125, %v1172
      %v1221 = vmul.f32 %v1220, 2.0
      %v1222 = vadd.f32 %v1078, %v1221
      %v1223 = vadd.f32 %v1222, %v1219
      %v1224 = vpack.c.bf16 %v1223, %v1223
      %v1226 = vsel %vm366, %v1224, 0
      %1228 = vmatprep.subr.bf16.mxu0 0
      %1229 = vmatpush1.bf16.msra.mxu0 %v57
      %1230 = vmatprep.subr.bf16.mxu0 0
      %1231 = vmatpush1.bf16.msra.mxu0 %v58
      %1232 = vmatprep.subr.bf16.mxu0 0
      %1233 = vmatpush1.bf16.msra.mxu0 %v59
      %1234 = vmatprep.subr.bf16.mxu0 0
      %1235 = vmatpush1.bf16.msra.mxu0 %v60
      %1236 = vmatprep.subr.bf16.mxu0 0
      %1237 = vmatpush1.bf16.msra.mxu0 0
      %1238 = vmatprep.subr.bf16.mxu0 0
      %1239 = vmatpush1.bf16.msra.mxu0 0
      %1240 = vmatprep.subr.bf16.mxu0 0
      %1241 = vmatpush1.bf16.msra.mxu0 0
      %1242 = vmatprep.subr.bf16.mxu0 0
      %1243 = vmatpush1.bf16.msra.mxu0 0
      %1244 = vmatprep.subr.bf16.mxu0 0
      %1245 = vmatpush1.bf16.msra.mxu0 0
      %1246 = vmatprep.subr.bf16.mxu0 0
      %1247 = vmatpush1.bf16.msra.mxu0 0
      %1248 = vmatprep.subr.bf16.mxu0 0
      %1249 = vmatpush1.bf16.msra.mxu0 0
      %1250 = vmatprep.subr.bf16.mxu0 0
      %1251 = vmatpush1.bf16.msra.mxu0 0
      %1252 = vmatprep.subr.bf16.mxu0 0
      %1253 = vmatpush1.bf16.msra.mxu0 0
      %1254 = vmatprep.subr.bf16.mxu0 0
      %1255 = vmatpush1.bf16.msra.mxu0 0
      %1256 = vmatprep.subr.bf16.mxu0 0
      %1257 = vmatpush1.bf16.msra.mxu0 0
      %1258 = vmatprep.subr.bf16.mxu0 0
      %1259 = vmatpush1.bf16.msra.mxu0 0
      %1260 = vmatprep.mubr.bf16.mxu0 0
      %1261 = vmatmul.mubr.bf16.gmra.mrb[0].mxu0 %v1226
      %v1262 = vpop.f32.mrb[0].mxu0
      %v1263 = vadd.f32 0.0, %v1262
      %v1264 = vpop.f32.mrb[0].mxu0
      %v1265 = vpop.f32.mrb[0].mxu0
      %v1266 = vpop.f32.mrb[0].mxu0
      %1267 = vdwg.mxu0
      %v1268 = vmul.f32 %v556, %v1263
      %v1269 = vadd.f32 %v1033, %v1268
      %v1270 = vadd.f32 %v1269, %v319
      %v1271 = vpack.c.bf16 %v1270, %v1270
      %v1273 = vsel %vm67, %v1271, 0
      %1275 = vmatprep.subr.bf16.mxu0 0
      %1276 = vmatpush1.bf16.msra.mxu0 %v55
      %1277 = vmatprep.subr.bf16.mxu0 0
      %1278 = vmatpush1.bf16.msra.mxu0 %v56
      %1279 = vmatprep.subr.bf16.mxu0 0
      %1280 = vmatpush1.bf16.msra.mxu0 0
      %1281 = vmatprep.subr.bf16.mxu0 0
      %1282 = vmatpush1.bf16.msra.mxu0 0
      %1283 = vmatprep.subr.bf16.mxu0 0
      %1284 = vmatpush1.bf16.msra.mxu0 0
      %1285 = vmatprep.subr.bf16.mxu0 0
      %1286 = vmatpush1.bf16.msra.mxu0 0
      %1287 = vmatprep.subr.bf16.mxu0 0
      %1288 = vmatpush1.bf16.msra.mxu0 0
      %1289 = vmatprep.subr.bf16.mxu0 0
      %1290 = vmatpush1.bf16.msra.mxu0 0
      %1291 = vmatprep.subr.bf16.mxu0 0
      %1292 = vmatpush1.bf16.msra.mxu0 0
      %1293 = vmatprep.subr.bf16.mxu0 0
      %1294 = vmatpush1.bf16.msra.mxu0 0
      %1295 = vmatprep.subr.bf16.mxu0 0
      %1296 = vmatpush1.bf16.msra.mxu0 0
      %1297 = vmatprep.subr.bf16.mxu0 0
      %1298 = vmatpush1.bf16.msra.mxu0 0
      %1299 = vmatprep.subr.bf16.mxu0 0
      %1300 = vmatpush1.bf16.msra.mxu0 0
      %1301 = vmatprep.subr.bf16.mxu0 0
      %1302 = vmatpush1.bf16.msra.mxu0 0
      %1303 = vmatprep.subr.bf16.mxu0 0
      %1304 = vmatpush1.bf16.msra.mxu0 0
      %1305 = vmatprep.subr.bf16.mxu0 0
      %1306 = vmatpush1.bf16.msra.mxu0 0
      %1307 = vmatprep.mubr.bf16.mxu0 0
      %1308 = vmatmul.mubr.bf16.gmra.mrb[0].mxu0 %v1273
      %v1309 = vpop.f32.mrb[0].mxu0
      %v1310 = vadd.f32 %v206, %v1309
      %v1311 = vpop.f32.mrb[0].mxu0
      %v1312 = vpop.f32.mrb[0].mxu0
      %v1313 = vpop.f32.mrb[0].mxu0
      %1314 = vdwg.mxu0
      %v1315 = vtanh.pop %v1310
      %v1316 = vpack.c.bf16 %v1315, %v1315
      %v1318 = vsel %vm366, %v1316, 0
      %1320 = vmatprep.subr.bf16.mxu0 0
      %1321 = vmatpush1.bf16.msra.mxu0 %v197
      %1322 = vmatprep.subr.bf16.mxu0 0
      %1323 = vmatpush1.bf16.msra.mxu0 %v198
      %1324 = vmatprep.subr.bf16.mxu0 0
      %1325 = vmatpush1.bf16.msra.mxu0 %v199
      %1326 = vmatprep.subr.bf16.mxu0 0
      %1327 = vmatpush1.bf16.msra.mxu0 %v200
      %1328 = vmatprep.subr.bf16.mxu0 0
      %1329 = vmatpush1.bf16.msra.mxu0 0
      %1330 = vmatprep.subr.bf16.mxu0 0
      %1331 = vmatpush1.bf16.msra.mxu0 0
      %1332 = vmatprep.subr.bf16.mxu0 0
      %1333 = vmatpush1.bf16.msra.mxu0 0
      %1334 = vmatprep.subr.bf16.mxu0 0
      %1335 = vmatpush1.bf16.msra.mxu0 0
      %1336 = vmatprep.subr.bf16.mxu0 0
      %1337 = vmatpush1.bf16.msra.mxu0 0
      %1338 = vmatprep.subr.bf16.mxu0 0
      %1339 = vmatpush1.bf16.msra.mxu0 0
      %1340 = vmatprep.subr.bf16.mxu0 0
      %1341 = vmatpush1.bf16.msra.mxu0 0
      %1342 = vmatprep.subr.bf16.mxu0 0
      %1343 = vmatpush1.bf16.msra.mxu0 0
      %1344 = vmatprep.subr.bf16.mxu0 0
      %1345 = vmatpush1.bf16.msra.mxu0 0
      %1346 = vmatprep.subr.bf16.mxu0 0
      %1347 = vmatpush1.bf16.msra.mxu0 0
      %1348 = vmatprep.subr.bf16.mxu0 0
      %1349 = vmatpush1.bf16.msra.mxu0 0
      %1350 = vmatprep.subr.bf16.mxu0 0
      %1351 = vmatpush1.bf16.msra.mxu0 0
      %1352 = vmatprep.mubr.bf16.mxu0 0
      %1353 = vmatmul.mubr.bf16.gmra.mrb[0].mxu0 %v1318
      %v1354 = vpop.f32.mrb[0].mxu0
      %v1355 = vadd.f32 %v297, %v1354
      %v1356 = vpop.f32.mrb[0].mxu0
      %v1357 = vpop.f32.mrb[0].mxu0
      %v1358 = vpop.f32.mrb[0].mxu0
      %1359 = vdwg.mxu0
      %v1360 = vmul.f32 %v410, %v1355
      %v1361 = vadd.f32 %v1310, %v1360
      %v1362 = vtanh.pop %v1361
      %v1363 = vpack.c.bf16 %v1362, %v1362
      %v1365 = vsel %vm366, %v1363, 0
      %1367 = vmatprep.subr.bf16.mxu0 0
      %1368 = vmatpush1.bf16.msra.mxu0 %v197
      %1369 = vmatprep.subr.bf16.mxu0 0
      %1370 = vmatpush1.bf16.msra.mxu0 %v198
      %1371 = vmatprep.subr.bf16.mxu0 0
      %1372 = vmatpush1.bf16.msra.mxu0 %v199
      %1373 = vmatprep.subr.bf16.mxu0 0
      %1374 = vmatpush1.bf16.msra.mxu0 %v200
      %1375 = vmatprep.subr.bf16.mxu0 0
      %1376 = vmatpush1.bf16.msra.mxu0 0
      %1377 = vmatprep.subr.bf16.mxu0 0
      %1378 = vmatpush1.bf16.msra.mxu0 0
      %1379 = vmatprep.subr.bf16.mxu0 0
      %1380 = vmatpush1.bf16.msra.mxu0 0
      %1381 = vmatprep.subr.bf16.mxu0 0
      %1382 = vmatpush1.bf16.msra.mxu0 0
      %1383 = vmatprep.subr.bf16.mxu0 0
      %1384 = vmatpush1.bf16.msra.mxu0 0
      %1385 = vmatprep.subr.bf16.mxu0 0
      %1386 = vmatpush1.bf16.msra.mxu0 0
      %1387 = vmatprep.subr.bf16.mxu0 0
      %1388 = vmatpush1.bf16.msra.mxu0 0
      %1389 = vmatprep.subr.bf16.mxu0 0
      %1390 = vmatpush1.bf16.msra.mxu0 0
      %1391 = vmatprep.subr.bf16.mxu0 0
      %1392 = vmatpush1.bf16.msra.mxu0 0
      %1393 = vmatprep.subr.bf16.mxu0 0
      %1394 = vmatpush1.bf16.msra.mxu0 0
      %1395 = vmatprep.subr.bf16.mxu0 0
      %1396 = vmatpush1.bf16.msra.mxu0 0
      %1397 = vmatprep.subr.bf16.mxu0 0
      %1398 = vmatpush1.bf16.msra.mxu0 0
      %1399 = vmatprep.mubr.bf16.mxu0 0
      %1400 = vmatmul.mubr.bf16.gmra.mrb[0].mxu0 %v1365
      %v1401 = vpop.f32.mrb[0].mxu0
      %v1402 = vadd.f32 %v297, %v1401
      %v1403 = vpop.f32.mrb[0].mxu0
      %v1404 = vpop.f32.mrb[0].mxu0
      %v1405 = vpop.f32.mrb[0].mxu0
      %1406 = vdwg.mxu0
      %v1407 = vmul.f32 %v410, %v1402
      %v1408 = vadd.f32 %v1310, %v1407
      %v1409 = vtanh.pop %v1408
      %v1410 = vpack.c.bf16 %v1409, %v1409
      %v1412 = vsel %vm366, %v1410, 0
      %1414 = vmatprep.subr.bf16.mxu0 0
      %1415 = vmatpush1.bf16.msra.mxu0 %v197
      %1416 = vmatprep.subr.bf16.mxu0 0
      %1417 = vmatpush1.bf16.msra.mxu0 %v198
      %1418 = vmatprep.subr.bf16.mxu0 0
      %1419 = vmatpush1.bf16.msra.mxu0 %v199
      %1420 = vmatprep.subr.bf16.mxu0 0
      %1421 = vmatpush1.bf16.msra.mxu0 %v200
      %1422 = vmatprep.subr.bf16.mxu0 0
      %1423 = vmatpush1.bf16.msra.mxu0 0
      %1424 = vmatprep.subr.bf16.mxu0 0
      %1425 = vmatpush1.bf16.msra.mxu0 0
      %1426 = vmatprep.subr.bf16.mxu0 0
      %1427 = vmatpush1.bf16.msra.mxu0 0
      %1428 = vmatprep.subr.bf16.mxu0 0
      %1429 = vmatpush1.bf16.msra.mxu0 0
      %1430 = vmatprep.subr.bf16.mxu0 0
      %1431 = vmatpush1.bf16.msra.mxu0 0
      %1432 = vmatprep.subr.bf16.mxu0 0
      %1433 = vmatpush1.bf16.msra.mxu0 0
      %1434 = vmatprep.subr.bf16.mxu0 0
      %1435 = vmatpush1.bf16.msra.mxu0 0
      %1436 = vmatprep.subr.bf16.mxu0 0
      %1437 = vmatpush1.bf16.msra.mxu0 0
      %1438 = vmatprep.subr.bf16.mxu0 0
      %1439 = vmatpush1.bf16.msra.mxu0 0
      %1440 = vmatprep.subr.bf16.mxu0 0
      %1441 = vmatpush1.bf16.msra.mxu0 0
      %1442 = vmatprep.subr.bf16.mxu0 0
      %1443 = vmatpush1.bf16.msra.mxu0 0
      %1444 = vmatprep.subr.bf16.mxu0 0
      %1445 = vmatpush1.bf16.msra.mxu0 0
      %1446 = vmatprep.mubr.bf16.mxu0 0
      %1447 = vmatmul.mubr.bf16.gmra.mrb[0].mxu0 %v1412
      %v1448 = vpop.f32.mrb[0].mxu0
      %v1449 = vadd.f32 %v297, %v1448
      %v1450 = vpop.f32.mrb[0].mxu0
      %v1451 = vpop.f32.mrb[0].mxu0
      %v1452 = vpop.f32.mrb[0].mxu0
      %1453 = vdwg.mxu0
      %v1454 = vmul.f32 %v318, %v1449
      %v1455 = vadd.f32 %v1310, %v1454
      %v1456 = vtanh.pop %v1455
      %v1457 = vadd.f32 %v1362, %v1409
      %v1458 = vmul.f32 %v1457, 2.0
      %v1459 = vadd.f32 %v1315, %v1458
      %v1460 = vadd.f32 %v1459, %v1456
      %v1461 = vpack.c.bf16 %v1460, %v1460
      %v1463 = vsel %vm366, %v1461, 0
      %1465 = vmatprep.subr.bf16.mxu0 0
      %1466 = vmatpush1.bf16.msra.mxu0 %v57
      %1467 = vmatprep.subr.bf16.mxu0 0
      %1468 = vmatpush1.bf16.msra.mxu0 %v58
      %1469 = vmatprep.subr.bf16.mxu0 0
      %1470 = vmatpush1.bf16.msra.mxu0 %v59
      %1471 = vmatprep.subr.bf16.mxu0 0
      %1472 = vmatpush1.bf16.msra.mxu0 %v60
      %1473 = vmatprep.subr.bf16.mxu0 0
      %1474 = vmatpush1.bf16.msra.mxu0 0
      %1475 = vmatprep.subr.bf16.mxu0 0
      %1476 = vmatpush1.bf16.msra.mxu0 0
      %1477 = vmatprep.subr.bf16.mxu0 0
      %1478 = vmatpush1.bf16.msra.mxu0 0
      %1479 = vmatprep.subr.bf16.mxu0 0
      %1480 = vmatpush1.bf16.msra.mxu0 0
      %1481 = vmatprep.subr.bf16.mxu0 0
      %1482 = vmatpush1.bf16.msra.mxu0 0
      %1483 = vmatprep.subr.bf16.mxu0 0
      %1484 = vmatpush1.bf16.msra.mxu0 0
      %1485 = vmatprep.subr.bf16.mxu0 0
      %1486 = vmatpush1.bf16.msra.mxu0 0
      %1487 = vmatprep.subr.bf16.mxu0 0
      %1488 = vmatpush1.bf16.msra.mxu0 0
      %1489 = vmatprep.subr.bf16.mxu0 0
      %1490 = vmatpush1.bf16.msra.mxu0 0
      %1491 = vmatprep.subr.bf16.mxu0 0
      %1492 = vmatpush1.bf16.msra.mxu0 0
      %1493 = vmatprep.subr.bf16.mxu0 0
      %1494 = vmatpush1.bf16.msra.mxu0 0
      %1495 = vmatprep.subr.bf16.mxu0 0
      %1496 = vmatpush1.bf16.msra.mxu0 0
      %1497 = vmatprep.mubr.bf16.mxu0 0
      %1498 = vmatmul.mubr.bf16.gmra.mrb[0].mxu0 %v1463
      %v1499 = vpop.f32.mrb[0].mxu0
      %v1500 = vadd.f32 0.0, %v1499
      %v1501 = vpop.f32.mrb[0].mxu0
      %v1502 = vpop.f32.mrb[0].mxu0
      %v1503 = vpop.f32.mrb[0].mxu0
      %1504 = vdwg.mxu0
      %v1505 = vmul.f32 %v556, %v1500
      %v1506 = vadd.f32 %v1270, %v1505
      %v1507 = vadd.f32 %v1506, %v319
      %v1508 = vpack.c.bf16 %v1507, %v1507
      %v1510 = vsel %vm67, %v1508, 0
      %1512 = vmatprep.subr.bf16.mxu0 0
      %1513 = vmatpush1.bf16.msra.mxu0 %v55
      %1514 = vmatprep.subr.bf16.mxu0 0
      %1515 = vmatpush1.bf16.msra.mxu0 %v56
      %1516 = vmatprep.subr.bf16.mxu0 0
      %1517 = vmatpush1.bf16.msra.mxu0 0
      %1518 = vmatprep.subr.bf16.mxu0 0
      %1519 = vmatpush1.bf16.msra.mxu0 0
      %1520 = vmatprep.subr.bf16.mxu0 0
      %1521 = vmatpush1.bf16.msra.mxu0 0
      %1522 = vmatprep.subr.bf16.mxu0 0
      %1523 = vmatpush1.bf16.msra.mxu0 0
      %1524 = vmatprep.subr.bf16.mxu0 0
      %1525 = vmatpush1.bf16.msra.mxu0 0
      %1526 = vmatprep.subr.bf16.mxu0 0
      %1527 = vmatpush1.bf16.msra.mxu0 0
      %1528 = vmatprep.subr.bf16.mxu0 0
      %1529 = vmatpush1.bf16.msra.mxu0 0
      %1530 = vmatprep.subr.bf16.mxu0 0
      %1531 = vmatpush1.bf16.msra.mxu0 0
      %1532 = vmatprep.subr.bf16.mxu0 0
      %1533 = vmatpush1.bf16.msra.mxu0 0
      %1534 = vmatprep.subr.bf16.mxu0 0
      %1535 = vmatpush1.bf16.msra.mxu0 0
      %1536 = vmatprep.subr.bf16.mxu0 0
      %1537 = vmatpush1.bf16.msra.mxu0 0
      %1538 = vmatprep.subr.bf16.mxu0 0
      %1539 = vmatpush1.bf16.msra.mxu0 0
      %1540 = vmatprep.subr.bf16.mxu0 0
      %1541 = vmatpush1.bf16.msra.mxu0 0
      %1542 = vmatprep.subr.bf16.mxu0 0
      %1543 = vmatpush1.bf16.msra.mxu0 0
      %1544 = vmatprep.mubr.bf16.mxu0 0
      %1545 = vmatmul.mubr.bf16.gmra.mrb[0].mxu0 %v1510
      %v1546 = vpop.f32.mrb[0].mxu0
      %v1547 = vadd.f32 %v206, %v1546
      %v1548 = vpop.f32.mrb[0].mxu0
      %v1549 = vpop.f32.mrb[0].mxu0
      %v1550 = vpop.f32.mrb[0].mxu0
      %1551 = vdwg.mxu0
      %v1552 = vtanh.pop %v1547
      %v1553 = vpack.c.bf16 %v1552, %v1552
      %v1555 = vsel %vm366, %v1553, 0
      %1557 = vmatprep.subr.bf16.mxu0 0
      %1558 = vmatpush1.bf16.msra.mxu0 %v197
      %1559 = vmatprep.subr.bf16.mxu0 0
      %1560 = vmatpush1.bf16.msra.mxu0 %v198
      %1561 = vmatprep.subr.bf16.mxu0 0
      %1562 = vmatpush1.bf16.msra.mxu0 %v199
      %1563 = vmatprep.subr.bf16.mxu0 0
      %1564 = vmatpush1.bf16.msra.mxu0 %v200
      %1565 = vmatprep.subr.bf16.mxu0 0
      %1566 = vmatpush1.bf16.msra.mxu0 0
      %1567 = vmatprep.subr.bf16.mxu0 0
      %1568 = vmatpush1.bf16.msra.mxu0 0
      %1569 = vmatprep.subr.bf16.mxu0 0
      %1570 = vmatpush1.bf16.msra.mxu0 0
      %1571 = vmatprep.subr.bf16.mxu0 0
      %1572 = vmatpush1.bf16.msra.mxu0 0
      %1573 = vmatprep.subr.bf16.mxu0 0
      %1574 = vmatpush1.bf16.msra.mxu0 0
      %1575 = vmatprep.subr.bf16.mxu0 0
      %1576 = vmatpush1.bf16.msra.mxu0 0
      %1577 = vmatprep.subr.bf16.mxu0 0
      %1578 = vmatpush1.bf16.msra.mxu0 0
      %1579 = vmatprep.subr.bf16.mxu0 0
      %1580 = vmatpush1.bf16.msra.mxu0 0
      %1581 = vmatprep.subr.bf16.mxu0 0
      %1582 = vmatpush1.bf16.msra.mxu0 0
      %1583 = vmatprep.subr.bf16.mxu0 0
      %1584 = vmatpush1.bf16.msra.mxu0 0
      %1585 = vmatprep.subr.bf16.mxu0 0
      %1586 = vmatpush1.bf16.msra.mxu0 0
      %1587 = vmatprep.subr.bf16.mxu0 0
      %1588 = vmatpush1.bf16.msra.mxu0 0
      %1589 = vmatprep.mubr.bf16.mxu0 0
      %1590 = vmatmul.mubr.bf16.gmra.mrb[0].mxu0 %v1555
      %v1591 = vpop.f32.mrb[0].mxu0
      %v1592 = vadd.f32 %v297, %v1591
      %v1593 = vpop.f32.mrb[0].mxu0
      %v1594 = vpop.f32.mrb[0].mxu0
      %v1595 = vpop.f32.mrb[0].mxu0
      %1596 = vdwg.mxu0
      %v1597 = vmul.f32 %v410, %v1592
      %v1598 = vadd.f32 %v1547, %v1597
      %v1599 = vtanh.pop %v1598
      %v1600 = vpack.c.bf16 %v1599, %v1599
      %v1602 = vsel %vm366, %v1600, 0
      %1604 = vmatprep.subr.bf16.mxu0 0
      %1605 = vmatpush1.bf16.msra.mxu0 %v197
      %1606 = vmatprep.subr.bf16.mxu0 0
      %1607 = vmatpush1.bf16.msra.mxu0 %v198
      %1608 = vmatprep.subr.bf16.mxu0 0
      %1609 = vmatpush1.bf16.msra.mxu0 %v199
      %1610 = vmatprep.subr.bf16.mxu0 0
      %1611 = vmatpush1.bf16.msra.mxu0 %v200
      %1612 = vmatprep.subr.bf16.mxu0 0
      %1613 = vmatpush1.bf16.msra.mxu0 0
      %1614 = vmatprep.subr.bf16.mxu0 0
      %1615 = vmatpush1.bf16.msra.mxu0 0
      %1616 = vmatprep.subr.bf16.mxu0 0
      %1617 = vmatpush1.bf16.msra.mxu0 0
      %1618 = vmatprep.subr.bf16.mxu0 0
      %1619 = vmatpush1.bf16.msra.mxu0 0
      %1620 = vmatprep.subr.bf16.mxu0 0
      %1621 = vmatpush1.bf16.msra.mxu0 0
      %1622 = vmatprep.subr.bf16.mxu0 0
      %1623 = vmatpush1.bf16.msra.mxu0 0
      %1624 = vmatprep.subr.bf16.mxu0 0
      %1625 = vmatpush1.bf16.msra.mxu0 0
      %1626 = vmatprep.subr.bf16.mxu0 0
      %1627 = vmatpush1.bf16.msra.mxu0 0
      %1628 = vmatprep.subr.bf16.mxu0 0
      %1629 = vmatpush1.bf16.msra.mxu0 0
      %1630 = vmatprep.subr.bf16.mxu0 0
      %1631 = vmatpush1.bf16.msra.mxu0 0
      %1632 = vmatprep.subr.bf16.mxu0 0
      %1633 = vmatpush1.bf16.msra.mxu0 0
      %1634 = vmatprep.subr.bf16.mxu0 0
      %1635 = vmatpush1.bf16.msra.mxu0 0
      %1636 = vmatprep.mubr.bf16.mxu0 0
      %1637 = vmatmul.mubr.bf16.gmra.mrb[0].mxu0 %v1602
      %v1638 = vpop.f32.mrb[0].mxu0
      %v1639 = vadd.f32 %v297, %v1638
      %v1640 = vpop.f32.mrb[0].mxu0
      %v1641 = vpop.f32.mrb[0].mxu0
      %v1642 = vpop.f32.mrb[0].mxu0
      %1643 = vdwg.mxu0
      %v1644 = vmul.f32 %v410, %v1639
      %v1645 = vadd.f32 %v1547, %v1644
      %v1646 = vtanh.pop %v1645
      %v1647 = vpack.c.bf16 %v1646, %v1646
      %v1649 = vsel %vm366, %v1647, 0
      %1651 = vmatprep.subr.bf16.mxu0 0
      %1652 = vmatpush1.bf16.msra.mxu0 %v197
      %1653 = vmatprep.subr.bf16.mxu0 0
      %1654 = vmatpush1.bf16.msra.mxu0 %v198
      %1655 = vmatprep.subr.bf16.mxu0 0
      %1656 = vmatpush1.bf16.msra.mxu0 %v199
      %1657 = vmatprep.subr.bf16.mxu0 0
      %1658 = vmatpush1.bf16.msra.mxu0 %v200
      %1659 = vmatprep.subr.bf16.mxu0 0
      %1660 = vmatpush1.bf16.msra.mxu0 0
      %1661 = vmatprep.subr.bf16.mxu0 0
      %1662 = vmatpush1.bf16.msra.mxu0 0
      %1663 = vmatprep.subr.bf16.mxu0 0
      %1664 = vmatpush1.bf16.msra.mxu0 0
      %1665 = vmatprep.subr.bf16.mxu0 0
      %1666 = vmatpush1.bf16.msra.mxu0 0
      %1667 = vmatprep.subr.bf16.mxu0 0
      %1668 = vmatpush1.bf16.msra.mxu0 0
      %1669 = vmatprep.subr.bf16.mxu0 0
      %1670 = vmatpush1.bf16.msra.mxu0 0
      %1671 = vmatprep.subr.bf16.mxu0 0
      %1672 = vmatpush1.bf16.msra.mxu0 0
      %1673 = vmatprep.subr.bf16.mxu0 0
      %1674 = vmatpush1.bf16.msra.mxu0 0
      %1675 = vmatprep.subr.bf16.mxu0 0
      %1676 = vmatpush1.bf16.msra.mxu0 0
      %1677 = vmatprep.subr.bf16.mxu0 0
      %1678 = vmatpush1.bf16.msra.mxu0 0
      %1679 = vmatprep.subr.bf16.mxu0 0
      %1680 = vmatpush1.bf16.msra.mxu0 0
      %1681 = vmatprep.subr.bf16.mxu0 0
      %1682 = vmatpush1.bf16.msra.mxu0 0
      %1683 = vmatprep.mubr.bf16.mxu0 0
      %1684 = vmatmul.mubr.bf16.gmra.mrb[0].mxu0 %v1649
      %v1685 = vpop.f32.mrb[0].mxu0
      %v1686 = vadd.f32 %v297, %v1685
      %v1687 = vpop.f32.mrb[0].mxu0
      %v1688 = vpop.f32.mrb[0].mxu0
      %v1689 = vpop.f32.mrb[0].mxu0
      %1690 = vdwg.mxu0
      %v1691 = vmul.f32 %v318, %v1686
      %v1692 = vadd.f32 %v1547, %v1691
      %v1693 = vtanh.pop %v1692
      %v1694 = vadd.f32 %v1599, %v1646
      %v1695 = vmul.f32 %v1694, 2.0
      %v1696 = vadd.f32 %v1552, %v1695
      %v1697 = vadd.f32 %v1696, %v1693
      %v1698 = vpack.c.bf16 %v1697, %v1697
      %v1700 = vsel %vm366, %v1698, 0
      %1702 = vmatprep.subr.bf16.mxu0 0
      %1703 = vmatpush1.bf16.msra.mxu0 %v57
      %1704 = vmatprep.subr.bf16.mxu0 0
      %1705 = vmatpush1.bf16.msra.mxu0 %v58
      %1706 = vmatprep.subr.bf16.mxu0 0
      %1707 = vmatpush1.bf16.msra.mxu0 %v59
      %1708 = vmatprep.subr.bf16.mxu0 0
      %1709 = vmatpush1.bf16.msra.mxu0 %v60
      %1710 = vmatprep.subr.bf16.mxu0 0
      %1711 = vmatpush1.bf16.msra.mxu0 0
      %1712 = vmatprep.subr.bf16.mxu0 0
      %1713 = vmatpush1.bf16.msra.mxu0 0
      %1714 = vmatprep.subr.bf16.mxu0 0
      %1715 = vmatpush1.bf16.msra.mxu0 0
      %1716 = vmatprep.subr.bf16.mxu0 0
      %1717 = vmatpush1.bf16.msra.mxu0 0
      %1718 = vmatprep.subr.bf16.mxu0 0
      %1719 = vmatpush1.bf16.msra.mxu0 0
      %1720 = vmatprep.subr.bf16.mxu0 0
      %1721 = vmatpush1.bf16.msra.mxu0 0
      %1722 = vmatprep.subr.bf16.mxu0 0
      %1723 = vmatpush1.bf16.msra.mxu0 0
      %1724 = vmatprep.subr.bf16.mxu0 0
      %1725 = vmatpush1.bf16.msra.mxu0 0
      %1726 = vmatprep.subr.bf16.mxu0 0
      %1727 = vmatpush1.bf16.msra.mxu0 0
      %1728 = vmatprep.subr.bf16.mxu0 0
      %1729 = vmatpush1.bf16.msra.mxu0 0
      %1730 = vmatprep.subr.bf16.mxu0 0
      %1731 = vmatpush1.bf16.msra.mxu0 0
      %1732 = vmatprep.subr.bf16.mxu0 0
      %1733 = vmatpush1.bf16.msra.mxu0 0
      %1734 = vmatprep.mubr.bf16.mxu0 0
      %1735 = vmatmul.mubr.bf16.gmra.mrb[0].mxu0 %v1700
      %v1736 = vpop.f32.mrb[0].mxu0
      %v1737 = vadd.f32 0.0, %v1736
      %v1738 = vpop.f32.mrb[0].mxu0
      %v1739 = vpop.f32.mrb[0].mxu0
      %v1740 = vpop.f32.mrb[0].mxu0
      %1741 = vdwg.mxu0
      %v1742 = vmul.f32 %v556, %v1737
      %v1743 = vadd.f32 %v1507, %v1742
      %v1744 = vadd.f32 %v1743, %v319
      %v1745 = vpack.c.bf16 %v1744, %v1744
      %v1747 = vsel %vm67, %v1745, 0
      %1749 = vmatprep.subr.bf16.mxu0 0
      %1750 = vmatpush1.bf16.msra.mxu0 %v55
      %1751 = vmatprep.subr.bf16.mxu0 0
      %1752 = vmatpush1.bf16.msra.mxu0 %v56
      %1753 = vmatprep.subr.bf16.mxu0 0
      %1754 = vmatpush1.bf16.msra.mxu0 0
      %1755 = vmatprep.subr.bf16.mxu0 0
      %1756 = vmatpush1.bf16.msra.mxu0 0
      %1757 = vmatprep.subr.bf16.mxu0 0
      %1758 = vmatpush1.bf16.msra.mxu0 0
      %1759 = vmatprep.subr.bf16.mxu0 0
      %1760 = vmatpush1.bf16.msra.mxu0 0
      %1761 = vmatprep.subr.bf16.mxu0 0
      %1762 = vmatpush1.bf16.msra.mxu0 0
      %1763 = vmatprep.subr.bf16.mxu0 0
      %1764 = vmatpush1.bf16.msra.mxu0 0
      %1765 = vmatprep.subr.bf16.mxu0 0
      %1766 = vmatpush1.bf16.msra.mxu0 0
      %1767 = vmatprep.subr.bf16.mxu0 0
      %1768 = vmatpush1.bf16.msra.mxu0 0
      %1769 = vmatprep.subr.bf16.mxu0 0
      %1770 = vmatpush1.bf16.msra.mxu0 0
      %1771 = vmatprep.subr.bf16.mxu0 0
      %1772 = vmatpush1.bf16.msra.mxu0 0
      %1773 = vmatprep.subr.bf16.mxu0 0
      %1774 = vmatpush1.bf16.msra.mxu0 0
      %1775 = vmatprep.subr.bf16.mxu0 0
      %1776 = vmatpush1.bf16.msra.mxu0 0
      %1777 = vmatprep.subr.bf16.mxu0 0
      %1778 = vmatpush1.bf16.msra.mxu0 0
      %1779 = vmatprep.subr.bf16.mxu0 0
      %1780 = vmatpush1.bf16.msra.mxu0 0
      %1781 = vmatprep.mubr.bf16.mxu0 0
      %1782 = vmatmul.mubr.bf16.gmra.mrb[0].mxu0 %v1747
      %v1783 = vpop.f32.mrb[0].mxu0
      %v1784 = vadd.f32 %v206, %v1783
      %v1785 = vpop.f32.mrb[0].mxu0
      %v1786 = vpop.f32.mrb[0].mxu0
      %v1787 = vpop.f32.mrb[0].mxu0
      %1788 = vdwg.mxu0
      %v1789 = vtanh.pop %v1784
      %v1790 = vpack.c.bf16 %v1789, %v1789
      %v1792 = vsel %vm366, %v1790, 0
      %1794 = vmatprep.subr.bf16.mxu0 0
      %1795 = vmatpush1.bf16.msra.mxu0 %v197
      %1796 = vmatprep.subr.bf16.mxu0 0
      %1797 = vmatpush1.bf16.msra.mxu0 %v198
      %1798 = vmatprep.subr.bf16.mxu0 0
      %1799 = vmatpush1.bf16.msra.mxu0 %v199
      %1800 = vmatprep.subr.bf16.mxu0 0
      %1801 = vmatpush1.bf16.msra.mxu0 %v200
      %1802 = vmatprep.subr.bf16.mxu0 0
      %1803 = vmatpush1.bf16.msra.mxu0 0
      %1804 = vmatprep.subr.bf16.mxu0 0
      %1805 = vmatpush1.bf16.msra.mxu0 0
      %1806 = vmatprep.subr.bf16.mxu0 0
      %1807 = vmatpush1.bf16.msra.mxu0 0
      %1808 = vmatprep.subr.bf16.mxu0 0
      %1809 = vmatpush1.bf16.msra.mxu0 0
      %1810 = vmatprep.subr.bf16.mxu0 0
      %1811 = vmatpush1.bf16.msra.mxu0 0
      %1812 = vmatprep.subr.bf16.mxu0 0
      %1813 = vmatpush1.bf16.msra.mxu0 0
      %1814 = vmatprep.subr.bf16.mxu0 0
      %1815 = vmatpush1.bf16.msra.mxu0 0
      %1816 = vmatprep.subr.bf16.mxu0 0
      %1817 = vmatpush1.bf16.msra.mxu0 0
      %1818 = vmatprep.subr.bf16.mxu0 0
      %1819 = vmatpush1.bf16.msra.mxu0 0
      %1820 = vmatprep.subr.bf16.mxu0 0
      %1821 = vmatpush1.bf16.msra.mxu0 0
      %1822 = vmatprep.subr.bf16.mxu0 0
      %1823 = vmatpush1.bf16.msra.mxu0 0
      %1824 = vmatprep.subr.bf16.mxu0 0
      %1825 = vmatpush1.bf16.msra.mxu0 0
      %1826 = vmatprep.mubr.bf16.mxu0 0
      %1827 = vmatmul.mubr.bf16.gmra.mrb[0].mxu0 %v1792
      %v1828 = vpop.f32.mrb[0].mxu0
      %v1829 = vadd.f32 %v297, %v1828
      %v1830 = vpop.f32.mrb[0].mxu0
      %v1831 = vpop.f32.mrb[0].mxu0
      %v1832 = vpop.f32.mrb[0].mxu0
      %1833 = vdwg.mxu0
      %v1834 = vmul.f32 %v410, %v1829
      %v1835 = vadd.f32 %v1784, %v1834
      %v1836 = vtanh.pop %v1835
      %v1837 = vpack.c.bf16 %v1836, %v1836
      %v1839 = vsel %vm366, %v1837, 0
      %1841 = vmatprep.subr.bf16.mxu0 0
      %1842 = vmatpush1.bf16.msra.mxu0 %v197
      %1843 = vmatprep.subr.bf16.mxu0 0
      %1844 = vmatpush1.bf16.msra.mxu0 %v198
      %1845 = vmatprep.subr.bf16.mxu0 0
      %1846 = vmatpush1.bf16.msra.mxu0 %v199
      %1847 = vmatprep.subr.bf16.mxu0 0
      %1848 = vmatpush1.bf16.msra.mxu0 %v200
      %1849 = vmatprep.subr.bf16.mxu0 0
      %1850 = vmatpush1.bf16.msra.mxu0 0
      %1851 = vmatprep.subr.bf16.mxu0 0
      %1852 = vmatpush1.bf16.msra.mxu0 0
      %1853 = vmatprep.subr.bf16.mxu0 0
      %1854 = vmatpush1.bf16.msra.mxu0 0
      %1855 = vmatprep.subr.bf16.mxu0 0
      %1856 = vmatpush1.bf16.msra.mxu0 0
      %1857 = vmatprep.subr.bf16.mxu0 0
      %1858 = vmatpush1.bf16.msra.mxu0 0
      %1859 = vmatprep.subr.bf16.mxu0 0
      %1860 = vmatpush1.bf16.msra.mxu0 0
      %1861 = vmatprep.subr.bf16.mxu0 0
      %1862 = vmatpush1.bf16.msra.mxu0 0
      %1863 = vmatprep.subr.bf16.mxu0 0
      %1864 = vmatpush1.bf16.msra.mxu0 0
      %1865 = vmatprep.subr.bf16.mxu0 0
      %1866 = vmatpush1.bf16.msra.mxu0 0
      %1867 = vmatprep.subr.bf16.mxu0 0
      %1868 = vmatpush1.bf16.msra.mxu0 0
      %1869 = vmatprep.subr.bf16.mxu0 0
      %1870 = vmatpush1.bf16.msra.mxu0 0
      %1871 = vmatprep.subr.bf16.mxu0 0
      %1872 = vmatpush1.bf16.msra.mxu0 0
      %1873 = vmatprep.mubr.bf16.mxu0 0
      %1874 = vmatmul.mubr.bf16.gmra.mrb[0].mxu0 %v1839
      %v1875 = vpop.f32.mrb[0].mxu0
      %v1876 = vadd.f32 %v297, %v1875
      %v1877 = vpop.f32.mrb[0].mxu0
      %v1878 = vpop.f32.mrb[0].mxu0
      %v1879 = vpop.f32.mrb[0].mxu0
      %1880 = vdwg.mxu0
      %v1881 = vmul.f32 %v410, %v1876
      %v1882 = vadd.f32 %v1784, %v1881
      %v1883 = vtanh.pop %v1882
      %v1884 = vpack.c.bf16 %v1883, %v1883
      %v1886 = vsel %vm366, %v1884, 0
      %1888 = vmatprep.subr.bf16.mxu0 0
      %1889 = vmatpush1.bf16.msra.mxu0 %v197
      %1890 = vmatprep.subr.bf16.mxu0 0
      %1891 = vmatpush1.bf16.msra.mxu0 %v198
      %1892 = vmatprep.subr.bf16.mxu0 0
      %1893 = vmatpush1.bf16.msra.mxu0 %v199
      %1894 = vmatprep.subr.bf16.mxu0 0
      %1895 = vmatpush1.bf16.msra.mxu0 %v200
      %1896 = vmatprep.subr.bf16.mxu0 0
      %1897 = vmatpush1.bf16.msra.mxu0 0
      %1898 = vmatprep.subr.bf16.mxu0 0
      %1899 = vmatpush1.bf16.msra.mxu0 0
      %1900 = vmatprep.subr.bf16.mxu0 0
      %1901 = vmatpush1.bf16.msra.mxu0 0
      %1902 = vmatprep.subr.bf16.mxu0 0
      %1903 = vmatpush1.bf16.msra.mxu0 0
      %1904 = vmatprep.subr.bf16.mxu0 0
      %1905 = vmatpush1.bf16.msra.mxu0 0
      %1906 = vmatprep.subr.bf16.mxu0 0
      %1907 = vmatpush1.bf16.msra.mxu0 0
      %1908 = vmatprep.subr.bf16.mxu0 0
      %1909 = vmatpush1.bf16.msra.mxu0 0
      %1910 = vmatprep.subr.bf16.mxu0 0
      %1911 = vmatpush1.bf16.msra.mxu0 0
      %1912 = vmatprep.subr.bf16.mxu0 0
      %1913 = vmatpush1.bf16.msra.mxu0 0
      %1914 = vmatprep.subr.bf16.mxu0 0
      %1915 = vmatpush1.bf16.msra.mxu0 0
      %1916 = vmatprep.subr.bf16.mxu0 0
      %1917 = vmatpush1.bf16.msra.mxu0 0
      %1918 = vmatprep.subr.bf16.mxu0 0
      %1919 = vmatpush1.bf16.msra.mxu0 0
      %1920 = vmatprep.mubr.bf16.mxu0 0
      %1921 = vmatmul.mubr.bf16.gmra.mrb[0].mxu0 %v1886
      %v1922 = vpop.f32.mrb[0].mxu0
      %v1923 = vadd.f32 %v297, %v1922
      %v1924 = vpop.f32.mrb[0].mxu0
      %v1925 = vpop.f32.mrb[0].mxu0
      %v1926 = vpop.f32.mrb[0].mxu0
      %1927 = vdwg.mxu0
      %v1928 = vmul.f32 %v318, %v1923
      %v1929 = vadd.f32 %v1784, %v1928
      %v1930 = vtanh.pop %v1929
      %v1931 = vadd.f32 %v1836, %v1883
      %v1932 = vmul.f32 %v1931, 2.0
      %v1933 = vadd.f32 %v1789, %v1932
      %v1934 = vadd.f32 %v1933, %v1930
      %v1935 = vpack.c.bf16 %v1934, %v1934
      %v1937 = vsel %vm366, %v1935, 0
      %1939 = vmatprep.subr.bf16.mxu0 0
      %1940 = vmatpush1.bf16.msra.mxu0 %v57
      %1941 = vmatprep.subr.bf16.mxu0 0
      %1942 = vmatpush1.bf16.msra.mxu0 %v58
      %1943 = vmatprep.subr.bf16.mxu0 0
      %1944 = vmatpush1.bf16.msra.mxu0 %v59
      %1945 = vmatprep.subr.bf16.mxu0 0
      %1946 = vmatpush1.bf16.msra.mxu0 %v60
      %1947 = vmatprep.subr.bf16.mxu0 0
      %1948 = vmatpush1.bf16.msra.mxu0 0
      %1949 = vmatprep.subr.bf16.mxu0 0
      %1950 = vmatpush1.bf16.msra.mxu0 0
      %1951 = vmatprep.subr.bf16.mxu0 0
      %1952 = vmatpush1.bf16.msra.mxu0 0
      %1953 = vmatprep.subr.bf16.mxu0 0
      %1954 = vmatpush1.bf16.msra.mxu0 0
      %1955 = vmatprep.subr.bf16.mxu0 0
      %1956 = vmatpush1.bf16.msra.mxu0 0
      %1957 = vmatprep.subr.bf16.mxu0 0
      %1958 = vmatpush1.bf16.msra.mxu0 0
      %1959 = vmatprep.subr.bf16.mxu0 0
      %1960 = vmatpush1.bf16.msra.mxu0 0
      %1961 = vmatprep.subr.bf16.mxu0 0
      %1962 = vmatpush1.bf16.msra.mxu0 0
      %1963 = vmatprep.subr.bf16.mxu0 0
      %1964 = vmatpush1.bf16.msra.mxu0 0
      %1965 = vmatprep.subr.bf16.mxu0 0
      %1966 = vmatpush1.bf16.msra.mxu0 0
      %1967 = vmatprep.subr.bf16.mxu0 0
      %1968 = vmatpush1.bf16.msra.mxu0 0
      %1969 = vmatprep.subr.bf16.mxu0 0
      %1970 = vmatpush1.bf16.msra.mxu0 0
      %1971 = vmatprep.mubr.bf16.mxu0 0
      %1972 = vmatmul.mubr.bf16.gmra.mrb[0].mxu0 %v1937
      %v1973 = vpop.f32.mrb[0].mxu0
      %v1974 = vadd.f32 0.0, %v1973
      %v1975 = vpop.f32.mrb[0].mxu0
      %v1976 = vpop.f32.mrb[0].mxu0
      %v1977 = vpop.f32.mrb[0].mxu0
      %1978 = vdwg.mxu0
      %v1979 = vmul.f32 %v556, %v1974
      %v1980 = vadd.f32 %v1744, %v1979
      %v1981 = vadd.f32 %v1980, %v319
      %v1982 = vpack.c.bf16 %v1981, %v1981
      %v1984 = vsel %vm67, %v1982, 0
      %1986 = vmatprep.subr.bf16.mxu0 0
      %1987 = vmatpush1.bf16.msra.mxu0 %v55
      %1988 = vmatprep.subr.bf16.mxu0 0
      %1989 = vmatpush1.bf16.msra.mxu0 %v56
      %1990 = vmatprep.subr.bf16.mxu0 0
      %1991 = vmatpush1.bf16.msra.mxu0 0
      %1992 = vmatprep.subr.bf16.mxu0 0
      %1993 = vmatpush1.bf16.msra.mxu0 0
      %1994 = vmatprep.subr.bf16.mxu0 0
      %1995 = vmatpush1.bf16.msra.mxu0 0
      %1996 = vmatprep.subr.bf16.mxu0 0
      %1997 = vmatpush1.bf16.msra.mxu0 0
      %1998 = vmatprep.subr.bf16.mxu0 0
      %1999 = vmatpush1.bf16.msra.mxu0 0
      %2000 = vmatprep.subr.bf16.mxu0 0
      %2001 = vmatpush1.bf16.msra.mxu0 0
      %2002 = vmatprep.subr.bf16.mxu0 0
      %2003 = vmatpush1.bf16.msra.mxu0 0
      %2004 = vmatprep.subr.bf16.mxu0 0
      %2005 = vmatpush1.bf16.msra.mxu0 0
      %2006 = vmatprep.subr.bf16.mxu0 0
      %2007 = vmatpush1.bf16.msra.mxu0 0
      %2008 = vmatprep.subr.bf16.mxu0 0
      %2009 = vmatpush1.bf16.msra.mxu0 0
      %2010 = vmatprep.subr.bf16.mxu0 0
      %2011 = vmatpush1.bf16.msra.mxu0 0
      %2012 = vmatprep.subr.bf16.mxu0 0
      %2013 = vmatpush1.bf16.msra.mxu0 0
      %2014 = vmatprep.subr.bf16.mxu0 0
      %2015 = vmatpush1.bf16.msra.mxu0 0
      %2016 = vmatprep.subr.bf16.mxu0 0
      %2017 = vmatpush1.bf16.msra.mxu0 0
      %2018 = vmatprep.mubr.bf16.mxu0 0
      %2019 = vmatmul.mubr.bf16.gmra.mrb[0].mxu0 %v1984
      %v2020 = vpop.f32.mrb[0].mxu0
      %v2021 = vadd.f32 %v206, %v2020
      %v2022 = vpop.f32.mrb[0].mxu0
      %v2023 = vpop.f32.mrb[0].mxu0
      %v2024 = vpop.f32.mrb[0].mxu0
      %2025 = vdwg.mxu0
      %v2026 = vtanh.pop %v2021
      %v2027 = vpack.c.bf16 %v2026, %v2026
      %v2029 = vsel %vm366, %v2027, 0
      %2031 = vmatprep.subr.bf16.mxu0 0
      %2032 = vmatpush1.bf16.msra.mxu0 %v197
      %2033 = vmatprep.subr.bf16.mxu0 0
      %2034 = vmatpush1.bf16.msra.mxu0 %v198
      %2035 = vmatprep.subr.bf16.mxu0 0
      %2036 = vmatpush1.bf16.msra.mxu0 %v199
      %2037 = vmatprep.subr.bf16.mxu0 0
      %2038 = vmatpush1.bf16.msra.mxu0 %v200
      %2039 = vmatprep.subr.bf16.mxu0 0
      %2040 = vmatpush1.bf16.msra.mxu0 0
      %2041 = vmatprep.subr.bf16.mxu0 0
      %2042 = vmatpush1.bf16.msra.mxu0 0
      %2043 = vmatprep.subr.bf16.mxu0 0
      %2044 = vmatpush1.bf16.msra.mxu0 0
      %2045 = vmatprep.subr.bf16.mxu0 0
      %2046 = vmatpush1.bf16.msra.mxu0 0
      %2047 = vmatprep.subr.bf16.mxu0 0
      %2048 = vmatpush1.bf16.msra.mxu0 0
      %2049 = vmatprep.subr.bf16.mxu0 0
      %2050 = vmatpush1.bf16.msra.mxu0 0
      %2051 = vmatprep.subr.bf16.mxu0 0
      %2052 = vmatpush1.bf16.msra.mxu0 0
      %2053 = vmatprep.subr.bf16.mxu0 0
      %2054 = vmatpush1.bf16.msra.mxu0 0
      %2055 = vmatprep.subr.bf16.mxu0 0
      %2056 = vmatpush1.bf16.msra.mxu0 0
      %2057 = vmatprep.subr.bf16.mxu0 0
      %2058 = vmatpush1.bf16.msra.mxu0 0
      %2059 = vmatprep.subr.bf16.mxu0 0
      %2060 = vmatpush1.bf16.msra.mxu0 0
      %2061 = vmatprep.subr.bf16.mxu0 0
      %2062 = vmatpush1.bf16.msra.mxu0 0
      %2063 = vmatprep.mubr.bf16.mxu0 0
      %2064 = vmatmul.mubr.bf16.gmra.mrb[0].mxu0 %v2029
      %v2065 = vpop.f32.mrb[0].mxu0
      %v2066 = vadd.f32 %v297, %v2065
      %v2067 = vpop.f32.mrb[0].mxu0
      %v2068 = vpop.f32.mrb[0].mxu0
      %v2069 = vpop.f32.mrb[0].mxu0
      %2070 = vdwg.mxu0
      %v2071 = vmul.f32 %v410, %v2066
      %v2072 = vadd.f32 %v2021, %v2071
      %v2073 = vtanh.pop %v2072
      %v2074 = vpack.c.bf16 %v2073, %v2073
      %v2076 = vsel %vm366, %v2074, 0
      %2078 = vmatprep.subr.bf16.mxu0 0
      %2079 = vmatpush1.bf16.msra.mxu0 %v197
      %2080 = vmatprep.subr.bf16.mxu0 0
      %2081 = vmatpush1.bf16.msra.mxu0 %v198
      %2082 = vmatprep.subr.bf16.mxu0 0
      %2083 = vmatpush1.bf16.msra.mxu0 %v199
      %2084 = vmatprep.subr.bf16.mxu0 0
      %2085 = vmatpush1.bf16.msra.mxu0 %v200
      %2086 = vmatprep.subr.bf16.mxu0 0
      %2087 = vmatpush1.bf16.msra.mxu0 0
      %2088 = vmatprep.subr.bf16.mxu0 0
      %2089 = vmatpush1.bf16.msra.mxu0 0
      %2090 = vmatprep.subr.bf16.mxu0 0
      %2091 = vmatpush1.bf16.msra.mxu0 0
      %2092 = vmatprep.subr.bf16.mxu0 0
      %2093 = vmatpush1.bf16.msra.mxu0 0
      %2094 = vmatprep.subr.bf16.mxu0 0
      %2095 = vmatpush1.bf16.msra.mxu0 0
      %2096 = vmatprep.subr.bf16.mxu0 0
      %2097 = vmatpush1.bf16.msra.mxu0 0
      %2098 = vmatprep.subr.bf16.mxu0 0
      %2099 = vmatpush1.bf16.msra.mxu0 0
      %2100 = vmatprep.subr.bf16.mxu0 0
      %2101 = vmatpush1.bf16.msra.mxu0 0
      %2102 = vmatprep.subr.bf16.mxu0 0
      %2103 = vmatpush1.bf16.msra.mxu0 0
      %2104 = vmatprep.subr.bf16.mxu0 0
      %2105 = vmatpush1.bf16.msra.mxu0 0
      %2106 = vmatprep.subr.bf16.mxu0 0
      %2107 = vmatpush1.bf16.msra.mxu0 0
      %2108 = vmatprep.subr.bf16.mxu0 0
      %2109 = vmatpush1.bf16.msra.mxu0 0
      %2110 = vmatprep.mubr.bf16.mxu0 0
      %2111 = vmatmul.mubr.bf16.gmra.mrb[0].mxu0 %v2076
      %v2112 = vpop.f32.mrb[0].mxu0
      %v2113 = vadd.f32 %v297, %v2112
      %v2114 = vpop.f32.mrb[0].mxu0
      %v2115 = vpop.f32.mrb[0].mxu0
      %v2116 = vpop.f32.mrb[0].mxu0
      %2117 = vdwg.mxu0
      %v2118 = vmul.f32 %v410, %v2113
      %v2119 = vadd.f32 %v2021, %v2118
      %v2120 = vtanh.pop %v2119
      %v2121 = vpack.c.bf16 %v2120, %v2120
      %v2123 = vsel %vm366, %v2121, 0
      %2125 = vmatprep.subr.bf16.mxu0 0
      %2126 = vmatpush1.bf16.msra.mxu0 %v197
      %2127 = vmatprep.subr.bf16.mxu0 0
      %2128 = vmatpush1.bf16.msra.mxu0 %v198
      %2129 = vmatprep.subr.bf16.mxu0 0
      %2130 = vmatpush1.bf16.msra.mxu0 %v199
      %2131 = vmatprep.subr.bf16.mxu0 0
      %2132 = vmatpush1.bf16.msra.mxu0 %v200
      %2133 = vmatprep.subr.bf16.mxu0 0
      %2134 = vmatpush1.bf16.msra.mxu0 0
      %2135 = vmatprep.subr.bf16.mxu0 0
      %2136 = vmatpush1.bf16.msra.mxu0 0
      %2137 = vmatprep.subr.bf16.mxu0 0
      %2138 = vmatpush1.bf16.msra.mxu0 0
      %2139 = vmatprep.subr.bf16.mxu0 0
      %2140 = vmatpush1.bf16.msra.mxu0 0
      %2141 = vmatprep.subr.bf16.mxu0 0
      %2142 = vmatpush1.bf16.msra.mxu0 0
      %2143 = vmatprep.subr.bf16.mxu0 0
      %2144 = vmatpush1.bf16.msra.mxu0 0
      %2145 = vmatprep.subr.bf16.mxu0 0
      %2146 = vmatpush1.bf16.msra.mxu0 0
      %2147 = vmatprep.subr.bf16.mxu0 0
      %2148 = vmatpush1.bf16.msra.mxu0 0
      %2149 = vmatprep.subr.bf16.mxu0 0
      %2150 = vmatpush1.bf16.msra.mxu0 0
      %2151 = vmatprep.subr.bf16.mxu0 0
      %2152 = vmatpush1.bf16.msra.mxu0 0
      %2153 = vmatprep.subr.bf16.mxu0 0
      %2154 = vmatpush1.bf16.msra.mxu0 0
      %2155 = vmatprep.subr.bf16.mxu0 0
      %2156 = vmatpush1.bf16.msra.mxu0 0
      %2157 = vmatprep.mubr.bf16.mxu0 0
      %2158 = vmatmul.mubr.bf16.gmra.mrb[0].mxu0 %v2123
      %v2159 = vpop.f32.mrb[0].mxu0
      %v2160 = vadd.f32 %v297, %v2159
      %v2161 = vpop.f32.mrb[0].mxu0
      %v2162 = vpop.f32.mrb[0].mxu0
      %v2163 = vpop.f32.mrb[0].mxu0
      %2164 = vdwg.mxu0
      %v2165 = vmul.f32 %v318, %v2160
      %v2166 = vadd.f32 %v2021, %v2165
      %v2167 = vtanh.pop %v2166
      %v2168 = vadd.f32 %v2073, %v2120
      %v2169 = vmul.f32 %v2168, 2.0
      %v2170 = vadd.f32 %v2026, %v2169
      %v2171 = vadd.f32 %v2170, %v2167
      %v2172 = vpack.c.bf16 %v2171, %v2171
      %v2174 = vsel %vm366, %v2172, 0
      %2176 = vmatprep.subr.bf16.mxu0 0
      %2177 = vmatpush1.bf16.msra.mxu0 %v57
      %2178 = vmatprep.subr.bf16.mxu0 0
      %2179 = vmatpush1.bf16.msra.mxu0 %v58
      %2180 = vmatprep.subr.bf16.mxu0 0
      %2181 = vmatpush1.bf16.msra.mxu0 %v59
      %2182 = vmatprep.subr.bf16.mxu0 0
      %2183 = vmatpush1.bf16.msra.mxu0 %v60
      %2184 = vmatprep.subr.bf16.mxu0 0
      %2185 = vmatpush1.bf16.msra.mxu0 0
      %2186 = vmatprep.subr.bf16.mxu0 0
      %2187 = vmatpush1.bf16.msra.mxu0 0
      %2188 = vmatprep.subr.bf16.mxu0 0
      %2189 = vmatpush1.bf16.msra.mxu0 0
      %2190 = vmatprep.subr.bf16.mxu0 0
      %2191 = vmatpush1.bf16.msra.mxu0 0
      %2192 = vmatprep.subr.bf16.mxu0 0
      %2193 = vmatpush1.bf16.msra.mxu0 0
      %2194 = vmatprep.subr.bf16.mxu0 0
      %2195 = vmatpush1.bf16.msra.mxu0 0
      %2196 = vmatprep.subr.bf16.mxu0 0
      %2197 = vmatpush1.bf16.msra.mxu0 0
      %2198 = vmatprep.subr.bf16.mxu0 0
      %2199 = vmatpush1.bf16.msra.mxu0 0
      %2200 = vmatprep.subr.bf16.mxu0 0
      %2201 = vmatpush1.bf16.msra.mxu0 0
      %2202 = vmatprep.subr.bf16.mxu0 0
      %2203 = vmatpush1.bf16.msra.mxu0 0
      %2204 = vmatprep.subr.bf16.mxu0 0
      %2205 = vmatpush1.bf16.msra.mxu0 0
      %2206 = vmatprep.subr.bf16.mxu0 0
      %2207 = vmatpush1.bf16.msra.mxu0 0
      %2208 = vmatprep.mubr.bf16.mxu0 0
      %2209 = vmatmul.mubr.bf16.gmra.mrb[0].mxu0 %v2174
      %v2210 = vpop.f32.mrb[0].mxu0
      %v2211 = vadd.f32 0.0, %v2210
      %v2212 = vpop.f32.mrb[0].mxu0
      %v2213 = vpop.f32.mrb[0].mxu0
      %v2214 = vpop.f32.mrb[0].mxu0
      %2215 = vdwg.mxu0
      %v2216 = vmul.f32 %v556, %v2211
      %v2217 = vadd.f32 %v1981, %v2216
      %v2218 = vadd.f32 %v2217, %v319
      %s2219 = smul.u32 %s307, 8
      %s2220 = scalar_lea.vmem [#allocation2], %s2219
      %2221 = vst.msk [vmem:[%s2220] sm:$0xff] %vm67, %v2218
    $region42: #{tpu_custom_call.1} parent=1 // loop_footer
      %s305 = sadd.s32 1, %s301
    $region43: #{tpu_custom_call.1} parent=1 // loop_footer_branch
      %300 = sbr.rel target = $region39
    $region44: #{tpu_custom_call.1} parent=1 // loop_exit
      _
    %v2222 = vld [vmem:[#allocation2] sm:$0xff]
    %v2223 = vld [vmem:[#allocation2 + $0x8] sm:$0xff]
    %v2224 = vld [vmem:[#allocation2 + $0x10] sm:$0xff]
    %v2225 = vld [vmem:[#allocation2 + $0x18] sm:$0xff]
    %v2226 = vld [vmem:[#allocation2 + $0x20] sm:$0xff]
    %v2227 = vld [vmem:[#allocation2 + $0x28] sm:$0xff]
    %v2228 = vld [vmem:[#allocation2 + $0x30] sm:$0xff]
    %v2229 = vld [vmem:[#allocation2 + $0x38] sm:$0xff]
    %v2230 = vpack.c.bf16 %v2223, %v2222
    %v2231 = vpack.c.bf16 %v2225, %v2224
    %v2232 = vpack.c.bf16 %v2227, %v2226
    %v2233 = vpack.c.bf16 %v2229, %v2228
    %v2235 = vsel %vm67, %v2230, 0
    %v2238 = vsel %vm67, %v2231, 0
    %v2241 = vsel %vm67, %v2232, 0
    %v2244 = vsel %vm67, %v2233, 0
    %2246 = vmatprep.subr.bf16.mxu0 0
    %2247 = vmatpush1.bf16.msra.mxu0 %v65
    %2248 = vmatprep.subr.bf16.mxu0 0
    %2249 = vmatpush1.bf16.msra.mxu0 %v66
    %2250 = vmatprep.subr.bf16.mxu0 0
    %2251 = vmatpush1.bf16.msra.mxu0 0
    %2252 = vmatprep.subr.bf16.mxu0 0
    %2253 = vmatpush1.bf16.msra.mxu0 0
    %2254 = vmatprep.subr.bf16.mxu0 0
    %2255 = vmatpush1.bf16.msra.mxu0 0
    %2256 = vmatprep.subr.bf16.mxu0 0
    %2257 = vmatpush1.bf16.msra.mxu0 0
    %2258 = vmatprep.subr.bf16.mxu0 0
    %2259 = vmatpush1.bf16.msra.mxu0 0
    %2260 = vmatprep.subr.bf16.mxu0 0
    %2261 = vmatpush1.bf16.msra.mxu0 0
    %2262 = vmatprep.subr.bf16.mxu0 0
    %2263 = vmatpush1.bf16.msra.mxu0 0
    %2264 = vmatprep.subr.bf16.mxu0 0
    %2265 = vmatpush1.bf16.msra.mxu0 0
    %2266 = vmatprep.subr.bf16.mxu0 0
    %2267 = vmatpush1.bf16.msra.mxu0 0
    %2268 = vmatprep.subr.bf16.mxu0 0
    %2269 = vmatpush1.bf16.msra.mxu0 0
    %2270 = vmatprep.subr.bf16.mxu0 0
    %2271 = vmatpush1.bf16.msra.mxu0 0
    %2272 = vmatprep.subr.bf16.mxu0 0
    %2273 = vmatpush1.bf16.msra.mxu0 0
    %2274 = vmatprep.subr.bf16.mxu0 0
    %2275 = vmatpush1.bf16.msra.mxu0 0
    %2276 = vmatprep.subr.bf16.mxu0 0
    %2277 = vmatpush1.bf16.msra.mxu0 0
    %2278 = vmatprep.mubr.bf16.mxu0 0
    %2279 = vmatmul.mubr.bf16.gmra.mrb[0].mxu0 %v2235
    %v2280 = vpop.f32.mrb[0].mxu0
    %v2281 = vadd.f32 %v220, %v2280
    %v2282 = vpop.f32.mrb[0].mxu0
    %v2283 = vpop.f32.mrb[0].mxu0
    %v2284 = vadd.f32 %v220, %v2283
    %v2285 = vpop.f32.mrb[0].mxu0
    %2286 = vmatprep.mubr.bf16.mxu0 0
    %2287 = vmatmul.mubr.bf16.gmra.mrb[0].mxu0 %v2238
    %v2288 = vpop.f32.mrb[0].mxu0
    %v2289 = vadd.f32 %v220, %v2288
    %v2290 = vpop.f32.mrb[0].mxu0
    %v2291 = vpop.f32.mrb[0].mxu0
    %v2292 = vadd.f32 %v220, %v2291
    %v2293 = vpop.f32.mrb[0].mxu0
    %2294 = vmatprep.mubr.bf16.mxu0 0
    %2295 = vmatmul.mubr.bf16.gmra.mrb[0].mxu0 %v2241
    %v2296 = vpop.f32.mrb[0].mxu0
    %v2297 = vadd.f32 %v220, %v2296
    %v2298 = vpop.f32.mrb[0].mxu0
    %v2299 = vpop.f32.mrb[0].mxu0
    %v2300 = vadd.f32 %v220, %v2299
    %v2301 = vpop.f32.mrb[0].mxu0
    %2302 = vmatprep.mubr.bf16.mxu0 0
    %2303 = vmatmul.mubr.bf16.gmra.mrb[0].mxu0 %v2244
    %v2304 = vpop.f32.mrb[0].mxu0
    %v2305 = vadd.f32 %v220, %v2304
    %v2306 = vpop.f32.mrb[0].mxu0
    %v2307 = vpop.f32.mrb[0].mxu0
    %v2308 = vadd.f32 %v220, %v2307
    %v2309 = vpop.f32.mrb[0].mxu0
    %2310 = vdwg.mxu0
    %vm2311 = vcmask 130048
    %2312 = vst.msk [vmem:[%s8] sm:$0xff] %vm2311, %v2281
    %2313 = vst.msk [vmem:[%s8 + $0x8] sm:$0xff] %vm2311, %v2284
    %2314 = vst.msk [vmem:[%s8 + $0x10] sm:$0xff] %vm2311, %v2289
    %2315 = vst.msk [vmem:[%s8 + $0x18] sm:$0xff] %vm2311, %v2292
    %2316 = vst.msk [vmem:[%s8 + $0x20] sm:$0xff] %vm2311, %v2297
    %2317 = vst.msk [vmem:[%s8 + $0x28] sm:$0xff] %vm2311, %v2300
    %2318 = vst.msk [vmem:[%s8 + $0x30] sm:$0xff] %vm2311, %v2305
    %2319 = vst.msk [vmem:[%s8 + $0x38] sm:$0xff] %vm2311, %v2308
    // Predicated region
    $region45: #{tpu_custom_call.1} parent=1 // pred_check
      _
    $region46: #{tpu_custom_call.1} parent=1 // pred_check_branch
      %2321 = sbr.rel (0) target = $region48
    $region47: #{tpu_custom_call.1} parent=1 // pred_region
      _
    $region48: #{tpu_custom_call.1} parent=1 // pred_fallthru
      _
    // Predicated region
    $region49: #{tpu_custom_call.1} parent=1 // pred_check
      _
    $region50: #{tpu_custom_call.1} parent=1 // pred_check_branch
      %2323 = sbr.rel (0) target = $region52
    $region51: #{tpu_custom_call.1} parent=1 // pred_region
      _
    $region52: #{tpu_custom_call.1} parent=1 // pred_fallthru
      _
    %2324 = vsyncpa [#allocation4], 1

</llo_original>
